<compile_context>
chip_gen: v7x
topology: tpu7x:2x2x1
jax: 0.10.0
libtpu: 0.0.40
codegen_flags: <defaults>
</compile_context>

<pallas_src>
import functools
import math

import numpy as np

import jax
import jax.numpy as jnp
from jax.experimental import pallas as pl
from jax.experimental.pallas import tpu as pltpu


# ----------------------------------------------------------------------------
# helpers
# ----------------------------------------------------------------------------
def _pick_tile(n, pref):
    """Largest divisor of n that is <= pref and a multiple of 8, else n (full).

    The full-dimension fallback always satisfies Mosaic's trailing-dim rules;
    the vmem_limit computation keeps the resulting working set honest.
    """
    if n <= pref:
        return n
    for t in range(min(pref, n), 0, -1):
        if n % t == 0 and t % 8 == 0:
            return t
    return n


def _vmem_cap_bytes(default_cap=64 * 1024 * 1024):
    """Physical VMEM per core (64 MiB on v7x, 128 MiB on v5e/v6e), w/ headroom."""
    cap = default_cap
    try:
        info = pltpu.get_tpu_info()
        cap = int(getattr(info, "vmem_capacity_bytes", default_cap))
    except Exception:
        pass
    return (cap * 3) // 4                      # leave 25% for the compiler


def _vmem_limit(needed_bytes):
    return int(min(max(2 * needed_bytes, 32 * 1024 * 1024), _vmem_cap_bytes()))


def _resident_specs(k, out):
    """Weight/bias specs: whole array, VMEM-resident, single-buffered."""
    return (pl.BlockSpec(memory_space=pltpu.MemorySpace.VMEM),
            pl.BlockSpec(memory_space=pltpu.MemorySpace.VMEM))


def _blocked_weight_specs(k, out):
    """Fallback: constant-index blocked specs (double-buffered by the runtime)."""
    return (pl.BlockSpec((k, out), lambda i: (0, 0)),
            pl.BlockSpec((1, out), lambda i: (0, 0)))


# ----------------------------------------------------------------------------
# Kernel 1: fused QKV projection  x @ [Wq|Wk|Wv] + b  -> q, k, v  (3 outputs)
# ----------------------------------------------------------------------------
def _qkv_proj_kernel(x_ref, w_ref, b_ref, q_ref, k_ref, v_ref):
    acc = jnp.dot(x_ref[...], w_ref[...], preferred_element_type=jnp.float32)
    acc = acc + b_ref[...]
    d = q_ref.shape[-1]
    q_ref[...] = acc[:, 0 * d:1 * d].astype(q_ref.dtype)
    k_ref[...] = acc[:, 1 * d:2 * d].astype(k_ref.dtype)
    v_ref[...] = acc[:, 2 * d:3 * d].astype(v_ref.dtype)


def qkv_proj_pallas(x, w, b, *, block_m=512):
    """x: (M, K) bf16; w: (K, 3D) bf16; b: (3D,) f32 -> 3 x (M, D) bf16."""
    M, K = x.shape
    OUT = w.shape[1]
    D = OUT // 3
    tm = _pick_tile(M, block_m)
    b2 = b.reshape(1, OUT).astype(jnp.float32)

    def build(resident_weights):
        if resident_weights:
            w_spec, b_spec = _resident_specs(K, OUT)
            w_copies = 1
        else:
            w_spec, b_spec = _blocked_weight_specs(K, OUT)
            w_copies = 2
        need = (2 * tm * K * 2                         # x tile, double-buffered
                + w_copies * (K * OUT * 2 + OUT * 4)   # weight + bias
                + 2 * 3 * tm * D * 2                   # q/k/v tiles, double-buffered
                + tm * OUT * 4)                        # f32 accumulator temp
        return pl.pallas_call(
            _qkv_proj_kernel,
            out_shape=(jax.ShapeDtypeStruct((M, D), jnp.bfloat16),) * 3,
            grid_spec=pltpu.PrefetchScalarGridSpec(
                num_scalar_prefetch=0,
                grid=(M // tm,),
                in_specs=[pl.BlockSpec((tm, K), lambda i: (i, 0)),
                          w_spec, b_spec],
                out_specs=[pl.BlockSpec((tm, D), lambda i: (i, 0))] * 3,
            ),
            compiler_params=pltpu.CompilerParams(
                dimension_semantics=("parallel",),
                vmem_limit_bytes=_vmem_limit(need)),
        )

    try:
        return build(True)(x, w, b2)
    except Exception:                       # fallback: blocked weight specs
        return build(False)(x, w, b2)


# ----------------------------------------------------------------------------
# Kernel 2: row-tiled linear  out[i] = x[i] @ W + b   (output projection)
# ----------------------------------------------------------------------------
def _linear_kernel(x_ref, w_ref, b_ref, o_ref):
    acc = jnp.dot(x_ref[...], w_ref[...], preferred_element_type=jnp.float32)
    o_ref[...] = (acc + b_ref[...]).astype(o_ref.dtype)


def linear_pallas(x, w, b, *, out_dtype=jnp.float32, block_m=512):
    """x: (M, K) bf16; w: (K, OUT) bf16; b: (OUT,) f32 -> (M, OUT) out_dtype."""
    M, K = x.shape
    OUT = w.shape[1]
    tm = _pick_tile(M, block_m)
    b2 = b.reshape(1, OUT).astype(jnp.float32)
    out_bytes = jnp.dtype(out_dtype).itemsize

    def build(resident_weights):
        if resident_weights:
            w_spec, b_spec = _resident_specs(K, OUT)
            w_copies = 1
        else:
            w_spec, b_spec = _blocked_weight_specs(K, OUT)
            w_copies = 2
        need = (2 * tm * K * 2
                + w_copies * (K * OUT * 2 + OUT * 4)
                + 2 * tm * OUT * out_bytes
                + tm * OUT * 4)
        return pl.pallas_call(
            _linear_kernel,
            out_shape=jax.ShapeDtypeStruct((M, OUT), out_dtype),
            grid_spec=pltpu.PrefetchScalarGridSpec(
                num_scalar_prefetch=0,
                grid=(M // tm,),
                in_specs=[pl.BlockSpec((tm, K), lambda i: (i, 0)),
                          w_spec, b_spec],
                out_specs=pl.BlockSpec((tm, OUT), lambda i: (i, 0)),
            ),
            compiler_params=pltpu.CompilerParams(
                dimension_semantics=("parallel",),
                vmem_limit_bytes=_vmem_limit(need)),
        )

    try:
        return build(True)(x, w, b2)
    except Exception:
        return build(False)(x, w, b2)


# ----------------------------------------------------------------------------
# Kernel 3: flash-attention core, heads packed along lanes (width = H*Dh = D)
# ----------------------------------------------------------------------------
def _flash_attn_kernel(num_heads, head_dim, q_ref, k_ref, v_ref, o_ref,
                       m_sc, l_sc, acc_sc):
    ki = pl.program_id(2)

    @pl.when(ki == 0)
    def _():
        m_sc[...] = jnp.full_like(m_sc, -jnp.inf)
        l_sc[...] = jnp.zeros_like(l_sc)
        acc_sc[...] = jnp.zeros_like(acc_sc)

    # Per-head online softmax; the head loop is a static unroll, all DMAs and
    # the final store stay lane-dense over the full D = H*Dh width.
    for h in range(num_heads):
        hs = slice(h * head_dim, (h + 1) * head_dim)
        q_h = q_ref[:, hs]                                   # (tq, Dh) bf16
        k_h = k_ref[:, hs]                                   # (tk, Dh) bf16
        # 1/sqrt(Dh) is folded into the Q projection weights (no rescale here).
        s = jax.lax.dot_general(
            q_h, k_h, dimension_numbers=(((1,), (1,)), ((), ())),
            preferred_element_type=jnp.float32)              # (tq, tk) f32

        m_prev = m_sc[:, h:h + 1]                            # (tq, 1)
        m_new = jnp.maximum(m_prev, jnp.max(s, axis=-1, keepdims=True))
        alpha = jnp.exp(m_prev - m_new)                      # (tq, 1)
        p = jnp.exp(s - m_new)                               # (tq, tk) f32
        l_sc[:, hs] = alpha * l_sc[:, hs] + jnp.sum(p, axis=-1, keepdims=True)
        acc_sc[:, hs] = alpha * acc_sc[:, hs] + jnp.dot(
            p.astype(v_ref.dtype), v_ref[:, hs],
            preferred_element_type=jnp.float32)
        m_sc[:, h:h + 1] = m_new

    @pl.when(ki == pl.num_programs(2) - 1)
    def _():
        inv_l = pl.reciprocal(l_sc[...], approx=True)        # (tq, D)
        o_ref[...] = (acc_sc[...] * inv_l).astype(o_ref.dtype)


def flash_attention_pallas(q, k, v, *, num_heads, head_dim,
                           block_q=256, block_k=256):
    """q, k, v: (B, N, D) bf16 with heads packed along D -> (B, N, D) bf16."""
    B, N, D = q.shape
    assert D == num_heads * head_dim
    tq = _pick_tile(N, block_q)
    tk = _pick_tile(N, block_k)
    kernel = functools.partial(_flash_attn_kernel, num_heads, head_dim)

    need = (2 * tq * D * 2                     # q tiles (double-buffered, bf16)
            + 2 * 2 * tk * D * 2               # k, v tiles
            + 2 * tq * D * 2                   # out tiles
            + (tq * num_heads + 2 * tq * D) * 4   # scratch m, l, acc (f32)
            + tq * tk * 6)                     # per-head scores f32 + probs bf16

    return pl.pallas_call(
        kernel,
        out_shape=jax.ShapeDtypeStruct((B, N, D), jnp.bfloat16),
        grid_spec=pltpu.PrefetchScalarGridSpec(
            num_scalar_prefetch=0,
            grid=(B, N // tq, N // tk),
            in_specs=[
                pl.BlockSpec((None, tq, D), lambda b, qi, ki: (b, qi, 0)),
                pl.BlockSpec((None, tk, D), lambda b, qi, ki: (b, ki, 0)),
                pl.BlockSpec((None, tk, D), lambda b, qi, ki: (b, ki, 0)),
            ],
            out_specs=pl.BlockSpec((None, tq, D), lambda b, qi, ki: (b, qi, 0)),
            scratch_shapes=[
                pltpu.VMEM((tq, num_heads), jnp.float32),  # running max (per head)
                pltpu.VMEM((tq, D), jnp.float32),          # running denom (head-repl.)
                pltpu.VMEM((tq, D), jnp.float32),          # output accumulator
            ],
        ),
        compiler_params=pltpu.CompilerParams(
            dimension_semantics=("parallel", "parallel", "arbitrary"),
            vmem_limit_bytes=_vmem_limit(need)),
    )(q, k, v)


# ----------------------------------------------------------------------------
# Module wrapper (plain-JAX glue: only free reshapes between kernels)
# ----------------------------------------------------------------------------
class VJEPASelfAttentionJAX:
    def __init__(self, *, hidden_size, num_attention_heads, qkv_bias=True,
                 attention_probs_dropout_prob=0.0, seed=0):
        if hidden_size % num_attention_heads != 0:
            raise ValueError("hidden_size must be divisible by num_attention_heads")
        self.hidden_size = hidden_size
        self.num_heads = num_attention_heads
        self.head_dim = hidden_size // num_attention_heads
        self.scale = 1.0 / math.sqrt(self.head_dim)
        self.dropout_p = float(attention_probs_dropout_prob)

        D = hidden_size
        key = jax.random.PRNGKey(seed)
        keys = jax.random.split(key, 8)
        bound = 1.0 / math.sqrt(D)

        def linear_init(kw, kb, out_dim, use_bias):
            w = jax.random.uniform(kw, (out_dim, D), jnp.float32, -bound, bound)
            if use_bias:
                b = jax.random.uniform(kb, (out_dim,), jnp.float32, -bound, bound)
            else:
                b = jnp.zeros((out_dim,), jnp.float32)
            return w, b

        wq, bq = linear_init(keys[0], keys[1], D, qkv_bias)
        wk, bk = linear_init(keys[2], keys[3], D, qkv_bias)
        wv, bv = linear_init(keys[4], keys[5], D, qkv_bias)
        wp, bp = linear_init(keys[6], keys[7], D, True)

        # Fold the 1/sqrt(head_dim) softmax scale into the Q projection so the
        # attention kernel never multiplies the (tq, tk) scores by it.
        wq = wq * self.scale
        bq = bq * self.scale

        # Fused QKV weight in matmul form (D, 3D); bf16 operands for the MXU,
        # f32 biases added in the kernel epilogue.
        self.w_qkv_bf16 = jnp.concatenate([wq.T, wk.T, wv.T], axis=1).astype(jnp.bfloat16)
        self.b_qkv = jnp.concatenate([bq, bk, bv], axis=0)
        self.w_proj_bf16 = wp.T.astype(jnp.bfloat16)
        self.b_proj = bp

    # ---- Pallas forward -----------------------------------------------------
    def forward(self, hidden_states, head_mask=None, output_attentions=False):
        # TODO(synk): head_mask, output_attentions and attention-probs dropout
        # (p > 0) are not representable in the flash-style kernel (the (N, N)
        # probability matrix is never materialized).
        if head_mask is not None or output_attentions or self.dropout_p > 0.0:
            raise NotImplementedError(
                "head_mask / output_attentions / dropout>0 are not supported "
                "by the Pallas flash-attention path.")
        B, N, D = hidden_states.shape
        H, Dh = self.num_heads, self.head_dim

        x = hidden_states.reshape(B * N, D).astype(jnp.bfloat16)
        # Fused QKV projection; emits q/k/v as three (B*N, D) bf16 arrays so
        # the attention kernel reads them directly (no split / transposes).
        q, k, v = qkv_proj_pallas(x, self.w_qkv_bf16, self.b_qkv)
        q = q.reshape(B, N, D)
        k = k.reshape(B, N, D)
        v = v.reshape(B, N, D)

        ctx = flash_attention_pallas(q, k, v, num_heads=H, head_dim=Dh)  # (B,N,D)
        out = linear_pallas(ctx.reshape(B * N, D), self.w_proj_bf16, self.b_proj,
                            out_dtype=jnp.float32)                        # (B*N, D)
        return out.reshape(B, N, D)

    # ---- pure-JAX reference (mirrors the bf16 roundings; for testing only) --
    def forward_ref(self, hidden_states):
        B, N, D = hidden_states.shape
        H, Dh = self.num_heads, self.head_dim
        f32 = jnp.float32

        x = hidden_states.reshape(B * N, D).astype(jnp.bfloat16).astype(f32)
        qkv = (x @ self.w_qkv_bf16.astype(f32)
               + self.b_qkv[None, :]).astype(jnp.bfloat16).astype(f32)
        q, k, v = jnp.split(qkv, 3, axis=-1)

        def heads(t):
            return t.reshape(B, N, H, Dh).transpose(0, 2, 1, 3)

        q, k, v = heads(q), heads(k), heads(v)
        s = jnp.einsum('bhqd,bhkd->bhqk', q, k)      # scale already folded into Wq
        p = jax.nn.softmax(s, axis=-1)
        ctx = jnp.einsum('bhqk,bhkd->bhqd',
                         p.astype(jnp.bfloat16).astype(f32), v)
        ctx = ctx.transpose(0, 2, 1, 3).reshape(B * N, D)
        ctx = ctx.astype(jnp.bfloat16).astype(f32)
        out = ctx @ self.w_proj_bf16.astype(f32) + self.b_proj[None, :]
        return out.reshape(B, N, D)


# ----------------------------------------------------------------------------
# test
# ----------------------------------------------------------------------------
if __name__ == "__main__":
    # Small config consistent with the module: (B, seq, hidden), heads | hidden.
    B, N, D, H = 2, 256, 32, 4

    module = VJEPASelfAttentionJAX(hidden_size=D, num_attention_heads=H,
                                   qkv_bias=True, seed=0)

    key = jax.random.PRNGKey(0)
    hidden_states = jax.random.normal(key, (B, N, D), dtype=jnp.float32)

    out = jax.block_until_ready(module.forward(hidden_states))
    assert out.shape == (B, N, D)

    ref = jax.block_until_ready(module.forward_ref(hidden_states))
    np.testing.assert_allclose(np.asarray(out, dtype=np.float32),
                               np.asarray(ref, dtype=np.float32),
                               rtol=2e-2, atol=2e-2)
    print("KERNEL_OK")
</pallas_src>

<mosaic_0001>
module attributes {stable_mosaic.version = 11 : i64} {
  func.func @_qkv_proj_kernel(%arg0: i32, %arg1: memref<512x32xbf16, #tpu.memory_space<vmem>>, %arg2: memref<32x96xbf16, #tpu.memory_space<vmem>>, %arg3: memref<1x96xf32, #tpu.memory_space<vmem>>, %arg4: memref<512x32xbf16, #tpu.memory_space<vmem>>, %arg5: memref<512x32xbf16, #tpu.memory_space<vmem>>, %arg6: memref<512x32xbf16, #tpu.memory_space<vmem>>) attributes {dimension_semantics = [#tpu.dimension_semantics<parallel>], iteration_bounds = array<i64: 1>, scalar_prefetch = 0 : i64, scratch_operands = 0 : i64, tpu.core_type = #tpu.core_type<tc>, window_params = [{transform_indices = @transform_0, window_bounds = array<i64: 512, 32>}, {pipeline_mode = #tpu.pipeline_mode<synchronous>, transform_indices = @transform_1, window_bounds = array<i64: 32, 96>}, {pipeline_mode = #tpu.pipeline_mode<synchronous>, transform_indices = @transform_2, window_bounds = array<i64: 1, 96>}, {transform_indices = @transform_3, window_bounds = array<i64: 512, 32>}, {transform_indices = @transform_4, window_bounds = array<i64: 512, 32>}, {transform_indices = @transform_5, window_bounds = array<i64: 512, 32>}]} {
    %c0 = arith.constant 0 : index
    %c0_0 = arith.constant 0 : index
    %0 = vector.load %arg1[%c0, %c0_0] : memref<512x32xbf16, #tpu.memory_space<vmem>>, vector<512x32xbf16>
    %c0_1 = arith.constant 0 : index
    %c0_2 = arith.constant 0 : index
    %1 = vector.load %arg2[%c0_1, %c0_2] : memref<32x96xbf16, #tpu.memory_space<vmem>>, vector<32x96xbf16>
    %cst = arith.constant dense<0.000000e+00> : vector<512x96xf32>
    %2 = tpu.matmul %0, %1, %cst {dimension_numbers = #tpu.dot_dimension_numbers<[1], [0], [0], [1], [0, 0, 1, 1], [], []>} : vector<512x32xbf16>, vector<32x96xbf16>, vector<512x96xf32> -> vector<512x96xf32>
    %c0_3 = arith.constant 0 : index
    %c0_4 = arith.constant 0 : index
    %3 = vector.load %arg3[%c0_3, %c0_4] : memref<1x96xf32, #tpu.memory_space<vmem>>, vector<1x96xf32>
    %4 = vector.broadcast %3 : vector<1x96xf32> to vector<512x96xf32>
    %5 = arith.addf %2, %4 : vector<512x96xf32>
    %6 = vector.extract_strided_slice %5 {offsets = [0, 0], sizes = [512, 32], strides = [1, 1]} : vector<512x96xf32> to vector<512x32xf32>
    %7 = arith.truncf %6 : vector<512x32xf32> to vector<512x32xbf16>
    %c0_5 = arith.constant 0 : index
    %c0_6 = arith.constant 0 : index
    %8 = vector.load %arg4[%c0_5, %c0_6] : memref<512x32xbf16, #tpu.memory_space<vmem>>, vector<512x32xbf16>
    tpu.vector_store %arg4[%c0_5, %c0_6], %7 {strides = array<i32>} : memref<512x32xbf16, #tpu.memory_space<vmem>>, vector<512x32xbf16>,
    %9 = vector.extract_strided_slice %5 {offsets = [0, 32], sizes = [512, 32], strides = [1, 1]} : vector<512x96xf32> to vector<512x32xf32>
    %10 = arith.truncf %9 : vector<512x32xf32> to vector<512x32xbf16>
    %c0_7 = arith.constant 0 : index
    %c0_8 = arith.constant 0 : index
    %11 = vector.load %arg5[%c0_7, %c0_8] : memref<512x32xbf16, #tpu.memory_space<vmem>>, vector<512x32xbf16>
    tpu.vector_store %arg5[%c0_7, %c0_8], %10 {strides = array<i32>} : memref<512x32xbf16, #tpu.memory_space<vmem>>, vector<512x32xbf16>,
    %12 = vector.extract_strided_slice %5 {offsets = [0, 64], sizes = [512, 32], strides = [1, 1]} : vector<512x96xf32> to vector<512x32xf32>
    %13 = arith.truncf %12 : vector<512x32xf32> to vector<512x32xbf16>
    %c0_9 = arith.constant 0 : index
    %c0_10 = arith.constant 0 : index
    %14 = vector.load %arg6[%c0_9, %c0_10] : memref<512x32xbf16, #tpu.memory_space<vmem>>, vector<512x32xbf16>
    tpu.vector_store %arg6[%c0_9, %c0_10], %13 {strides = array<i32>} : memref<512x32xbf16, #tpu.memory_space<vmem>>, vector<512x32xbf16>,
    return
  }
  func.func @transform_0(%arg0: i32) -> (i32, i32) {
    %c0_i32 = arith.constant 0 : i32
    %c0_i32_0 = arith.constant 0 : i32
    return %arg0, %c0_i32 : i32, i32
  }
  func.func @transform_1(%arg0: i32) -> (i32, i32) {
    %c0_i32 = arith.constant 0 : i32
    %c0_i32_0 = arith.constant 0 : i32
    %c0_i32_1 = arith.constant 0 : i32
    return %c0_i32, %c0_i32_0 : i32, i32
  }
  func.func @transform_2(%arg0: i32) -> (i32, i32) {
    %c0_i32 = arith.constant 0 : i32
    %c0_i32_0 = arith.constant 0 : i32
    %c0_i32_1 = arith.constant 0 : i32
    return %c0_i32, %c0_i32_0 : i32, i32
  }
  func.func @transform_3(%arg0: i32) -> (i32, i32) {
    %c0_i32 = arith.constant 0 : i32
    %c0_i32_0 = arith.constant 0 : i32
    return %arg0, %c0_i32 : i32, i32
  }
  func.func @transform_4(%arg0: i32) -> (i32, i32) {
    %c0_i32 = arith.constant 0 : i32
    %c0_i32_0 = arith.constant 0 : i32
    return %arg0, %c0_i32 : i32, i32
  }
  func.func @transform_5(%arg0: i32) -> (i32, i32) {
    %c0_i32 = arith.constant 0 : i32
    %c0_i32_0 = arith.constant 0 : i32
    return %arg0, %c0_i32 : i32, i32
  }
}

module attributes {stable_mosaic.version = 11 : i64} {
  func.func @_qkv_proj_kernel(%arg0: i32, %arg1: memref<512x32xbf16, #tpu.memory_space<vmem>>, %arg2: memref<32x96xbf16, #tpu.memory_space<vmem>>, %arg3: memref<1x96xf32, #tpu.memory_space<vmem>>, %arg4: memref<512x32xbf16, #tpu.memory_space<vmem>>, %arg5: memref<512x32xbf16, #tpu.memory_space<vmem>>, %arg6: memref<512x32xbf16, #tpu.memory_space<vmem>>) attributes {dimension_semantics = [#tpu.dimension_semantics<parallel>], iteration_bounds = array<i64: 1>, scalar_prefetch = 0 : i64, scratch_operands = 0 : i64, tpu.core_type = #tpu.core_type<tc>, window_params = [{transform_indices = @transform_0, window_bounds = array<i64: 512, 32>}, {pipeline_mode = #tpu.pipeline_mode<synchronous>, transform_indices = @transform_1, window_bounds = array<i64: 32, 96>}, {pipeline_mode = #tpu.pipeline_mode<synchronous>, transform_indices = @transform_2, window_bounds = array<i64: 1, 96>}, {transform_indices = @transform_3, window_bounds = array<i64: 512, 32>}, {transform_indices = @transform_4, window_bounds = array<i64: 512, 32>}, {transform_indices = @transform_5, window_bounds = array<i64: 512, 32>}]} {
    %c0 = arith.constant 0 : index
    %c0_0 = arith.constant 0 : index
    %0 = vector.load %arg1[%c0, %c0_0] : memref<512x32xbf16, #tpu.memory_space<vmem>>, vector<512x32xbf16>
    %c0_1 = arith.constant 0 : index
    %c0_2 = arith.constant 0 : index
    %1 = vector.load %arg2[%c0_1, %c0_2] : memref<32x96xbf16, #tpu.memory_space<vmem>>, vector<32x96xbf16>
    %cst = arith.constant dense<0.000000e+00> : vector<512x96xf32>
    %2 = tpu.matmul %0, %1, %cst {dimension_numbers = #tpu.dot_dimension_numbers<[1], [0], [0], [1], [0, 0, 1, 1], [], []>} : vector<512x32xbf16>, vector<32x96xbf16>, vector<512x96xf32> -> vector<512x96xf32>
    %c0_3 = arith.constant 0 : index
    %c0_4 = arith.constant 0 : index
    %3 = vector.load %arg3[%c0_3, %c0_4] : memref<1x96xf32, #tpu.memory_space<vmem>>, vector<1x96xf32>
    %4 = vector.broadcast %3 : vector<1x96xf32> to vector<512x96xf32>
    %5 = arith.addf %2, %4 : vector<512x96xf32>
    %6 = vector.extract_strided_slice %5 {offsets = [0, 0], sizes = [512, 32], strides = [1, 1]} : vector<512x96xf32> to vector<512x32xf32>
    %7 = arith.truncf %6 : vector<512x32xf32> to vector<512x32xbf16>
    %c0_5 = arith.constant 0 : index
    %c0_6 = arith.constant 0 : index
    %8 = vector.load %arg4[%c0_5, %c0_6] : memref<512x32xbf16, #tpu.memory_space<vmem>>, vector<512x32xbf16>
    tpu.vector_store %arg4[%c0_5, %c0_6], %7 {strides = array<i32>} : memref<512x32xbf16, #tpu.memory_space<vmem>>, vector<512x32xbf16>,
    %9 = vector.extract_strided_slice %5 {offsets = [0, 32], sizes = [512, 32], strides = [1, 1]} : vector<512x96xf32> to vector<512x32xf32>
    %10 = arith.truncf %9 : vector<512x32xf32> to vector<512x32xbf16>
    %c0_7 = arith.constant 0 : index
    %c0_8 = arith.constant 0 : index
    %11 = vector.load %arg5[%c0_7, %c0_8] : memref<512x32xbf16, #tpu.memory_space<vmem>>, vector<512x32xbf16>
    tpu.vector_store %arg5[%c0_7, %c0_8], %10 {strides = array<i32>} : memref<512x32xbf16, #tpu.memory_space<vmem>>, vector<512x32xbf16>,
    %12 = vector.extract_strided_slice %5 {offsets = [0, 64], sizes = [512, 32], strides = [1, 1]} : vector<512x96xf32> to vector<512x32xf32>
    %13 = arith.truncf %12 : vector<512x32xf32> to vector<512x32xbf16>
    %c0_9 = arith.constant 0 : index
    %c0_10 = arith.constant 0 : index
    %14 = vector.load %arg6[%c0_9, %c0_10] : memref<512x32xbf16, #tpu.memory_space<vmem>>, vector<512x32xbf16>
    tpu.vector_store %arg6[%c0_9, %c0_10], %13 {strides = array<i32>} : memref<512x32xbf16, #tpu.memory_space<vmem>>, vector<512x32xbf16>,
    return
  }
  func.func @transform_0(%arg0: i32) -> (i32, i32) {
    %c0_i32 = arith.constant 0 : i32
    %c0_i32_0 = arith.constant 0 : i32
    return %arg0, %c0_i32 : i32, i32
  }
  func.func @transform_1(%arg0: i32) -> (i32, i32) {
    %c0_i32 = arith.constant 0 : i32
    %c0_i32_0 = arith.constant 0 : i32
    %c0_i32_1 = arith.constant 0 : i32
    return %c0_i32, %c0_i32_0 : i32, i32
  }
  func.func @transform_2(%arg0: i32) -> (i32, i32) {
    %c0_i32 = arith.constant 0 : i32
    %c0_i32_0 = arith.constant 0 : i32
    %c0_i32_1 = arith.constant 0 : i32
    return %c0_i32, %c0_i32_0 : i32, i32
  }
  func.func @transform_3(%arg0: i32) -> (i32, i32) {
    %c0_i32 = arith.constant 0 : i32
    %c0_i32_0 = arith.constant 0 : i32
    return %arg0, %c0_i32 : i32, i32
  }
  func.func @transform_4(%arg0: i32) -> (i32, i32) {
    %c0_i32 = arith.constant 0 : i32
    %c0_i32_0 = arith.constant 0 : i32
    return %arg0, %c0_i32 : i32, i32
  }
  func.func @transform_5(%arg0: i32) -> (i32, i32) {
    %c0_i32 = arith.constant 0 : i32
    %c0_i32_0 = arith.constant 0 : i32
    return %arg0, %c0_i32 : i32, i32
  }
}

</mosaic_0001>

<llo_original>
// kernel: tpu_custom_call.1
$region0: #{tpu_custom_call.1}
  #allocation0 [shape = 'u32[]', space=smem, size = 0x4, offset = 0x4, fixed_abs, tag = 'smem constant byte address 0x4 - core index']
  #allocation1 [shape = 'u32[144,128]{1,0:T(1,128)}', space=vmem, size = 0x12000, scoped, tag = 'internal scratch']
  %s0 = inlined_call_operand.vmem [shape: bf16[512,32], index: 0, kind: input, shape index: {}]
  %s1 = inlined_call_operand.vmem [shape: bf16[32,96], index: 1, kind: input, shape index: {}]
  %s2 = inlined_call_operand.vmem [shape: f32[1,96], index: 2, kind: input, shape index: {}]
  %s3 = inlined_call_operand.vmem [shape: bf16[512,32], index: 3, kind: output, shape index: {0}]
  %s4 = inlined_call_operand.vmem [shape: bf16[512,32], index: 4, kind: output, shape index: {1}]
  %s5 = inlined_call_operand.vmem [shape: bf16[512,32], index: 5, kind: output, shape index: {2}]
  %6 = xla_tuple %s3, %s4, %s5
  %s7 = sld [smem:[#allocation0]]
  $region38: #{tpu_custom_call.1} parent=0
    _
  %s9 = ssub.s32 1, %s7
  %s10 = scalar_select 0, %s9, %s7
  // Predicated region
  $region2: #{tpu_custom_call.1} parent=0 // pred_check
    _
  $region3: #{tpu_custom_call.1} parent=0 // pred_check_branch
    %12 = sbr.rel (0) target = $region5
  $region4: #{tpu_custom_call.1} parent=0 // pred_region
    _
  $region5: #{tpu_custom_call.1} parent=0 // pred_fallthru
    _
  // Predicated region
  $region6: #{tpu_custom_call.1} parent=0 // pred_check
    _
  $region7: #{tpu_custom_call.1} parent=0 // pred_check_branch
    %14 = sbr.rel (0) target = $region9
  $region8: #{tpu_custom_call.1} parent=0 // pred_region
    _
  $region9: #{tpu_custom_call.1} parent=0 // pred_fallthru
    _
  // Predicated region
  $region10: #{tpu_custom_call.1} parent=0 // pred_check
    _
  $region11: #{tpu_custom_call.1} parent=0 // pred_check_branch
    %16 = sbr.rel (0) target = $region13
  $region12: #{tpu_custom_call.1} parent=0 // pred_region
    _
  $region13: #{tpu_custom_call.1} parent=0 // pred_fallthru
    _
  %v18 = vld [vmem:[%s0] sm:$0xf]
  %v19 = vld [vmem:[%s0 + $0x4] sm:$0xf]
  %v20 = vld [vmem:[%s0 + $0x8] sm:$0xf]
  %v21 = vld [vmem:[%s0 + $0xc] sm:$0xf]
  %v22 = vld [vmem:[%s0 + $0x10] sm:$0xf]
  %v23 = vld [vmem:[%s0 + $0x14] sm:$0xf]
  %v24 = vld [vmem:[%s0 + $0x18] sm:$0xf]
  %v25 = vld [vmem:[%s0 + $0x1c] sm:$0xf]
  %v26 = vld [vmem:[%s0 + $0x20] sm:$0xf]
  %v27 = vld [vmem:[%s0 + $0x24] sm:$0xf]
  %v28 = vld [vmem:[%s0 + $0x28] sm:$0xf]
  %v29 = vld [vmem:[%s0 + $0x2c] sm:$0xf]
  %v30 = vld [vmem:[%s0 + $0x30] sm:$0xf]
  %v31 = vld [vmem:[%s0 + $0x34] sm:$0xf]
  %v32 = vld [vmem:[%s0 + $0x38] sm:$0xf]
  %v33 = vld [vmem:[%s0 + $0x3c] sm:$0xf]
  %v34 = vld [vmem:[%s0 + $0x40] sm:$0xf]
  %v35 = vld [vmem:[%s0 + $0x44] sm:$0xf]
  %v36 = vld [vmem:[%s0 + $0x48] sm:$0xf]
  %v37 = vld [vmem:[%s0 + $0x4c] sm:$0xf]
  %v38 = vld [vmem:[%s0 + $0x50] sm:$0xf]
  %v39 = vld [vmem:[%s0 + $0x54] sm:$0xf]
  %v40 = vld [vmem:[%s0 + $0x58] sm:$0xf]
  %v41 = vld [vmem:[%s0 + $0x5c] sm:$0xf]
  %v42 = vld [vmem:[%s0 + $0x60] sm:$0xf]
  %v43 = vld [vmem:[%s0 + $0x64] sm:$0xf]
  %v44 = vld [vmem:[%s0 + $0x68] sm:$0xf]
  %v45 = vld [vmem:[%s0 + $0x6c] sm:$0xf]
  %v46 = vld [vmem:[%s0 + $0x70] sm:$0xf]
  %v47 = vld [vmem:[%s0 + $0x74] sm:$0xf]
  %v48 = vld [vmem:[%s0 + $0x78] sm:$0xf]
  %v49 = vld [vmem:[%s0 + $0x7c] sm:$0xf]
  %v50 = vld [vmem:[%s0 + $0x80] sm:$0xf]
  %v51 = vld [vmem:[%s0 + $0x84] sm:$0xf]
  %v52 = vld [vmem:[%s0 + $0x88] sm:$0xf]
  %v53 = vld [vmem:[%s0 + $0x8c] sm:$0xf]
  %v54 = vld [vmem:[%s0 + $0x90] sm:$0xf]
  %v55 = vld [vmem:[%s0 + $0x94] sm:$0xf]
  %v56 = vld [vmem:[%s0 + $0x98] sm:$0xf]
  %v57 = vld [vmem:[%s0 + $0x9c] sm:$0xf]
  %v58 = vld [vmem:[%s0 + $0xa0] sm:$0xf]
  %v59 = vld [vmem:[%s0 + $0xa4] sm:$0xf]
  %v60 = vld [vmem:[%s0 + $0xa8] sm:$0xf]
  %v61 = vld [vmem:[%s0 + $0xac] sm:$0xf]
  %v62 = vld [vmem:[%s0 + $0xb0] sm:$0xf]
  %v63 = vld [vmem:[%s0 + $0xb4] sm:$0xf]
  %v64 = vld [vmem:[%s0 + $0xb8] sm:$0xf]
  %v65 = vld [vmem:[%s0 + $0xbc] sm:$0xf]
  %v66 = vld [vmem:[%s0 + $0xc0] sm:$0xf]
  %v67 = vld [vmem:[%s0 + $0xc4] sm:$0xf]
  %v68 = vld [vmem:[%s0 + $0xc8] sm:$0xf]
  %v69 = vld [vmem:[%s0 + $0xcc] sm:$0xf]
  %v70 = vld [vmem:[%s0 + $0xd0] sm:$0xf]
  %v71 = vld [vmem:[%s0 + $0xd4] sm:$0xf]
  %v72 = vld [vmem:[%s0 + $0xd8] sm:$0xf]
  %v73 = vld [vmem:[%s0 + $0xdc] sm:$0xf]
  %v74 = vld [vmem:[%s0 + $0xe0] sm:$0xf]
  %v75 = vld [vmem:[%s0 + $0xe4] sm:$0xf]
  %v76 = vld [vmem:[%s0 + $0xe8] sm:$0xf]
  %v77 = vld [vmem:[%s0 + $0xec] sm:$0xf]
  %v78 = vld [vmem:[%s0 + $0xf0] sm:$0xf]
  %v79 = vld [vmem:[%s0 + $0xf4] sm:$0xf]
  %v80 = vld [vmem:[%s0 + $0xf8] sm:$0xf]
  %v81 = vld [vmem:[%s0 + $0xfc] sm:$0xf]
  %v82 = vld [vmem:[%s1] sm:$0xf]
  %v83 = vld [vmem:[%s1 + $0x4] sm:$0xf]
  %v84 = vld [vmem:[%s1 + $0x8] sm:$0xf]
  %v85 = vld [vmem:[%s1 + $0xc] sm:$0xf]
  %v86 = vld [vmem:[%s2] sm:$0x1]
  %v88 = vlaneseq
  %v89 = vshrl.u32 %v88, 7
  %v90 = vsub.s32 0, %v89
  %v91 = vrot.slane %v86, %v90
  %v157 = vunpack.c.l.b16 %v18
  %v158 = vunpack.c.l.b16 %v19
  %v159 = vunpack.c.l.b16 %v20
  %v160 = vunpack.c.l.b16 %v21
  %v161 = vunpack.c.l.b16 %v22
  %v162 = vunpack.c.l.b16 %v23
  %v163 = vunpack.c.l.b16 %v24
  %v164 = vunpack.c.l.b16 %v25
  %v165 = vunpack.c.l.b16 %v26
  %v166 = vunpack.c.l.b16 %v27
  %v167 = vunpack.c.l.b16 %v28
  %v168 = vunpack.c.l.b16 %v29
  %v169 = vunpack.c.l.b16 %v30
  %v170 = vunpack.c.l.b16 %v31
  %v171 = vunpack.c.l.b16 %v32
  %v172 = vunpack.c.l.b16 %v33
  %v173 = vunpack.c.l.b16 %v34
  %v174 = vunpack.c.l.b16 %v35
  %v175 = vunpack.c.l.b16 %v36
  %v176 = vunpack.c.l.b16 %v37
  %v177 = vunpack.c.l.b16 %v38
  %v178 = vunpack.c.l.b16 %v39
  %v179 = vunpack.c.l.b16 %v40
  %v180 = vunpack.c.l.b16 %v41
  %v181 = vunpack.c.l.b16 %v42
  %v182 = vunpack.c.l.b16 %v43
  %v183 = vunpack.c.l.b16 %v44
  %v184 = vunpack.c.l.b16 %v45
  %v185 = vunpack.c.l.b16 %v46
  %v186 = vunpack.c.l.b16 %v47
  %v187 = vunpack.c.l.b16 %v48
  %v188 = vunpack.c.l.b16 %v49
  %v189 = vunpack.c.l.b16 %v50
  %v190 = vunpack.c.l.b16 %v51
  %v191 = vunpack.c.l.b16 %v52
  %v192 = vunpack.c.l.b16 %v53
  %v193 = vunpack.c.l.b16 %v54
  %v194 = vunpack.c.l.b16 %v55
  %v195 = vunpack.c.l.b16 %v56
  %v196 = vunpack.c.l.b16 %v57
  %v197 = vunpack.c.l.b16 %v58
  %v198 = vunpack.c.l.b16 %v59
  %v199 = vunpack.c.l.b16 %v60
  %v200 = vunpack.c.l.b16 %v61
  %v201 = vunpack.c.l.b16 %v62
  %v202 = vunpack.c.l.b16 %v63
  %v203 = vunpack.c.l.b16 %v64
  %v204 = vunpack.c.l.b16 %v65
  %v205 = vunpack.c.l.b16 %v66
  %v206 = vunpack.c.l.b16 %v67
  %v207 = vunpack.c.l.b16 %v68
  %v208 = vunpack.c.l.b16 %v69
  %v209 = vunpack.c.l.b16 %v70
  %v210 = vunpack.c.l.b16 %v71
  %v211 = vunpack.c.l.b16 %v72
  %v212 = vunpack.c.l.b16 %v73
  %v213 = vunpack.c.l.b16 %v74
  %v214 = vunpack.c.l.b16 %v75
  %v215 = vunpack.c.l.b16 %v76
  %v216 = vunpack.c.l.b16 %v77
  %v217 = vunpack.c.l.b16 %v78
  %v218 = vunpack.c.l.b16 %v79
  %v219 = vunpack.c.l.b16 %v80
  %v220 = vunpack.c.l.b16 %v81
  %v221 = vpack.c.b16 %v158, %v157
  %v222 = vpack.c.b16 %v160, %v159
  %v223 = vpack.c.b16 %v162, %v161
  %v224 = vpack.c.b16 %v164, %v163
  %v225 = vpack.c.b16 %v166, %v165
  %v226 = vpack.c.b16 %v168, %v167
  %v227 = vpack.c.b16 %v170, %v169
  %v228 = vpack.c.b16 %v172, %v171
  %v229 = vpack.c.b16 %v174, %v173
  %v230 = vpack.c.b16 %v176, %v175
  %v231 = vpack.c.b16 %v178, %v177
  %v232 = vpack.c.b16 %v180, %v179
  %v233 = vpack.c.b16 %v182, %v181
  %v234 = vpack.c.b16 %v184, %v183
  %v235 = vpack.c.b16 %v186, %v185
  %v236 = vpack.c.b16 %v188, %v187
  %v237 = vpack.c.b16 %v190, %v189
  %v238 = vpack.c.b16 %v192, %v191
  %v239 = vpack.c.b16 %v194, %v193
  %v240 = vpack.c.b16 %v196, %v195
  %v241 = vpack.c.b16 %v198, %v197
  %v242 = vpack.c.b16 %v200, %v199
  %v243 = vpack.c.b16 %v202, %v201
  %v244 = vpack.c.b16 %v204, %v203
  %v245 = vpack.c.b16 %v206, %v205
  %v246 = vpack.c.b16 %v208, %v207
  %v247 = vpack.c.b16 %v210, %v209
  %v248 = vpack.c.b16 %v212, %v211
  %v249 = vpack.c.b16 %v214, %v213
  %v250 = vpack.c.b16 %v216, %v215
  %v251 = vpack.c.b16 %v218, %v217
  %v252 = vpack.c.b16 %v220, %v219
  %v257 = vunpack.c.l.b16 %v82
  %v258 = vunpack.c.l.b16 %v83
  %v259 = vunpack.c.l.b16 %v84
  %v260 = vunpack.c.l.b16 %v85
  %v261 = vpack.c.b16 %v258, %v257
  %v262 = vpack.c.b16 %v260, %v259
  %vm265 = vcmask 261120
  %v267 = vsel %vm265, %v221, 0
  %v270 = vsel %vm265, %v222, 0
  %v273 = vsel %vm265, %v223, 0
  %v276 = vsel %vm265, %v224, 0
  %v279 = vsel %vm265, %v225, 0
  %v282 = vsel %vm265, %v226, 0
  %v285 = vsel %vm265, %v227, 0
  %v288 = vsel %vm265, %v228, 0
  %v291 = vsel %vm265, %v229, 0
  %v294 = vsel %vm265, %v230, 0
  %v297 = vsel %vm265, %v231, 0
  %v300 = vsel %vm265, %v232, 0
  %v303 = vsel %vm265, %v233, 0
  %v306 = vsel %vm265, %v234, 0
  %v309 = vsel %vm265, %v235, 0
  %v312 = vsel %vm265, %v236, 0
  %v315 = vsel %vm265, %v237, 0
  %v318 = vsel %vm265, %v238, 0
  %v321 = vsel %vm265, %v239, 0
  %v324 = vsel %vm265, %v240, 0
  %v327 = vsel %vm265, %v241, 0
  %v330 = vsel %vm265, %v242, 0
  %v333 = vsel %vm265, %v243, 0
  %v336 = vsel %vm265, %v244, 0
  %v339 = vsel %vm265, %v245, 0
  %v342 = vsel %vm265, %v246, 0
  %v345 = vsel %vm265, %v247, 0
  %v348 = vsel %vm265, %v248, 0
  %v351 = vsel %vm265, %v249, 0
  %v354 = vsel %vm265, %v250, 0
  %v357 = vsel %vm265, %v251, 0
  %v360 = vsel %vm265, %v252, 0
  %362 = vmatprep.subr.bf16.mxu0 0
  %363 = vmatpush1.bf16.msra.mxu0 %v261
  %364 = vmatprep.subr.bf16.mxu0 0
  %365 = vmatpush1.bf16.msra.mxu0 %v262
  %366 = vmatprep.subr.bf16.mxu0 0
  %367 = vmatpush1.bf16.msra.mxu0 0
  %368 = vmatprep.subr.bf16.mxu0 0
  %369 = vmatpush1.bf16.msra.mxu0 0
  %370 = vmatprep.subr.bf16.mxu0 0
  %371 = vmatpush1.bf16.msra.mxu0 0
  %372 = vmatprep.subr.bf16.mxu0 0
  %373 = vmatpush1.bf16.msra.mxu0 0
  %374 = vmatprep.subr.bf16.mxu0 0
  %375 = vmatpush1.bf16.msra.mxu0 0
  %376 = vmatprep.subr.bf16.mxu0 0
  %377 = vmatpush1.bf16.msra.mxu0 0
  %378 = vmatprep.subr.bf16.mxu0 0
  %379 = vmatpush1.bf16.msra.mxu0 0
  %380 = vmatprep.subr.bf16.mxu0 0
  %381 = vmatpush1.bf16.msra.mxu0 0
  %382 = vmatprep.subr.bf16.mxu0 0
  %383 = vmatpush1.bf16.msra.mxu0 0
  %384 = vmatprep.subr.bf16.mxu0 0
  %385 = vmatpush1.bf16.msra.mxu0 0
  %386 = vmatprep.subr.bf16.mxu0 0
  %387 = vmatpush1.bf16.msra.mxu0 0
  %388 = vmatprep.subr.bf16.mxu0 0
  %389 = vmatpush1.bf16.msra.mxu0 0
  %390 = vmatprep.subr.bf16.mxu0 0
  %391 = vmatpush1.bf16.msra.mxu0 0
  %392 = vmatprep.subr.bf16.mxu0 0
  %393 = vmatpush1.bf16.msra.mxu0 0
  %394 = vmatprep.mubr.bf16.mxu0 0
  %395 = vmatmul.mubr.bf16.gmra.mrb[0].mxu0 %v267
  %v396 = vpop.f32.mrb[0].mxu0
  %v397 = vadd.f32 %v91, %v396
  %v398 = vpop.f32.mrb[0].mxu0
  %v399 = vpop.f32.mrb[0].mxu0
  %v400 = vadd.f32 %v91, %v399
  %v401 = vpop.f32.mrb[0].mxu0
  %402 = vmatprep.mubr.bf16.mxu0 0
  %403 = vmatmul.mubr.bf16.gmra.mrb[0].mxu0 %v270
  %v404 = vpop.f32.mrb[0].mxu0
  %v405 = vadd.f32 %v91, %v404
  %v406 = vpop.f32.mrb[0].mxu0
  %v407 = vpop.f32.mrb[0].mxu0
  %v408 = vadd.f32 %v91, %v407
  %v409 = vpop.f32.mrb[0].mxu0
  %410 = vmatprep.mubr.bf16.mxu0 0
  %411 = vmatmul.mubr.bf16.gmra.mrb[0].mxu0 %v273
  %v412 = vpop.f32.mrb[0].mxu0
  %v413 = vadd.f32 %v91, %v412
  %v414 = vpop.f32.mrb[0].mxu0
  %v415 = vpop.f32.mrb[0].mxu0
  %v416 = vadd.f32 %v91, %v415
  %v417 = vpop.f32.mrb[0].mxu0
  %418 = vmatprep.mubr.bf16.mxu0 0
  %419 = vmatmul.mubr.bf16.gmra.mrb[0].mxu0 %v276
  %v420 = vpop.f32.mrb[0].mxu0
  %v421 = vadd.f32 %v91, %v420
  %v422 = vpop.f32.mrb[0].mxu0
  %v423 = vpop.f32.mrb[0].mxu0
  %v424 = vadd.f32 %v91, %v423
  %v425 = vpop.f32.mrb[0].mxu0
  %426 = vmatprep.mubr.bf16.mxu0 0
  %427 = vmatmul.mubr.bf16.gmra.mrb[0].mxu0 %v279
  %v428 = vpop.f32.mrb[0].mxu0
  %v429 = vadd.f32 %v91, %v428
  %v430 = vpop.f32.mrb[0].mxu0
  %v431 = vpop.f32.mrb[0].mxu0
  %v432 = vadd.f32 %v91, %v431
  %v433 = vpop.f32.mrb[0].mxu0
  %434 = vmatprep.mubr.bf16.mxu0 0
  %435 = vmatmul.mubr.bf16.gmra.mrb[0].mxu0 %v282
  %v436 = vpop.f32.mrb[0].mxu0
  %v437 = vadd.f32 %v91, %v436
  %v438 = vpop.f32.mrb[0].mxu0
  %v439 = vpop.f32.mrb[0].mxu0
  %v440 = vadd.f32 %v91, %v439
  %v441 = vpop.f32.mrb[0].mxu0
  %442 = vmatprep.mubr.bf16.mxu0 0
  %443 = vmatmul.mubr.bf16.gmra.mrb[0].mxu0 %v285
  %v444 = vpop.f32.mrb[0].mxu0
  %v445 = vadd.f32 %v91, %v444
  %v446 = vpop.f32.mrb[0].mxu0
  %v447 = vpop.f32.mrb[0].mxu0
  %v448 = vadd.f32 %v91, %v447
  %v449 = vpop.f32.mrb[0].mxu0
  %450 = vmatprep.mubr.bf16.mxu0 0
  %451 = vmatmul.mubr.bf16.gmra.mrb[0].mxu0 %v288
  %v452 = vpop.f32.mrb[0].mxu0
  %v453 = vadd.f32 %v91, %v452
  %v454 = vpop.f32.mrb[0].mxu0
  %v455 = vpop.f32.mrb[0].mxu0
  %v456 = vadd.f32 %v91, %v455
  %v457 = vpop.f32.mrb[0].mxu0
  %458 = vmatprep.mubr.bf16.mxu0 0
  %459 = vmatmul.mubr.bf16.gmra.mrb[0].mxu0 %v291
  %v460 = vpop.f32.mrb[0].mxu0
  %v461 = vadd.f32 %v91, %v460
  %v462 = vpop.f32.mrb[0].mxu0
  %v463 = vpop.f32.mrb[0].mxu0
  %v464 = vadd.f32 %v91, %v463
  %v465 = vpop.f32.mrb[0].mxu0
  %466 = vmatprep.mubr.bf16.mxu0 0
  %467 = vmatmul.mubr.bf16.gmra.mrb[0].mxu0 %v294
  %v468 = vpop.f32.mrb[0].mxu0
  %v469 = vadd.f32 %v91, %v468
  %v470 = vpop.f32.mrb[0].mxu0
  %v471 = vpop.f32.mrb[0].mxu0
  %v472 = vadd.f32 %v91, %v471
  %v473 = vpop.f32.mrb[0].mxu0
  %474 = vmatprep.mubr.bf16.mxu0 0
  %475 = vmatmul.mubr.bf16.gmra.mrb[0].mxu0 %v297
  %v476 = vpop.f32.mrb[0].mxu0
  %v477 = vadd.f32 %v91, %v476
  %v478 = vpop.f32.mrb[0].mxu0
  %v479 = vpop.f32.mrb[0].mxu0
  %v480 = vadd.f32 %v91, %v479
  %v481 = vpop.f32.mrb[0].mxu0
  %482 = vmatprep.mubr.bf16.mxu0 0
  %483 = vmatmul.mubr.bf16.gmra.mrb[0].mxu0 %v300
  %v484 = vpop.f32.mrb[0].mxu0
  %v485 = vadd.f32 %v91, %v484
  %v486 = vpop.f32.mrb[0].mxu0
  %v487 = vpop.f32.mrb[0].mxu0
  %v488 = vadd.f32 %v91, %v487
  %v489 = vpop.f32.mrb[0].mxu0
  %490 = vmatprep.mubr.bf16.mxu0 0
  %491 = vmatmul.mubr.bf16.gmra.mrb[0].mxu0 %v303
  %v492 = vpop.f32.mrb[0].mxu0
  %v493 = vadd.f32 %v91, %v492
  %v494 = vpop.f32.mrb[0].mxu0
  %v495 = vpop.f32.mrb[0].mxu0
  %v496 = vadd.f32 %v91, %v495
  %v497 = vpop.f32.mrb[0].mxu0
  %498 = vmatprep.mubr.bf16.mxu0 0
  %499 = vmatmul.mubr.bf16.gmra.mrb[0].mxu0 %v306
  %v500 = vpop.f32.mrb[0].mxu0
  %v501 = vadd.f32 %v91, %v500
  %v502 = vpop.f32.mrb[0].mxu0
  %v503 = vpop.f32.mrb[0].mxu0
  %v504 = vadd.f32 %v91, %v503
  %v505 = vpop.f32.mrb[0].mxu0
  %506 = vmatprep.mubr.bf16.mxu0 0
  %507 = vmatmul.mubr.bf16.gmra.mrb[0].mxu0 %v309
  %v508 = vpop.f32.mrb[0].mxu0
  %v509 = vadd.f32 %v91, %v508
  %v510 = vpop.f32.mrb[0].mxu0
  %v511 = vpop.f32.mrb[0].mxu0
  %v512 = vadd.f32 %v91, %v511
  %v513 = vpop.f32.mrb[0].mxu0
  %514 = vmatprep.mubr.bf16.mxu0 0
  %515 = vmatmul.mubr.bf16.gmra.mrb[0].mxu0 %v312
  %v516 = vpop.f32.mrb[0].mxu0
  %v517 = vadd.f32 %v91, %v516
  %v518 = vpop.f32.mrb[0].mxu0
  %v519 = vpop.f32.mrb[0].mxu0
  %v520 = vadd.f32 %v91, %v519
  %v521 = vpop.f32.mrb[0].mxu0
  %522 = vmatprep.mubr.bf16.mxu0 0
  %523 = vmatmul.mubr.bf16.gmra.mrb[0].mxu0 %v315
  %v524 = vpop.f32.mrb[0].mxu0
  %v525 = vadd.f32 %v91, %v524
  %v526 = vpop.f32.mrb[0].mxu0
  %v527 = vpop.f32.mrb[0].mxu0
  %v528 = vadd.f32 %v91, %v527
  %v529 = vpop.f32.mrb[0].mxu0
  %530 = vmatprep.mubr.bf16.mxu0 0
  %531 = vmatmul.mubr.bf16.gmra.mrb[0].mxu0 %v318
  %v532 = vpop.f32.mrb[0].mxu0
  %v533 = vadd.f32 %v91, %v532
  %v534 = vpop.f32.mrb[0].mxu0
  %v535 = vpop.f32.mrb[0].mxu0
  %v536 = vadd.f32 %v91, %v535
  %v537 = vpop.f32.mrb[0].mxu0
  %538 = vmatprep.mubr.bf16.mxu0 0
  %539 = vmatmul.mubr.bf16.gmra.mrb[0].mxu0 %v321
  %v540 = vpop.f32.mrb[0].mxu0
  %v541 = vadd.f32 %v91, %v540
  %v542 = vpop.f32.mrb[0].mxu0
  %v543 = vpop.f32.mrb[0].mxu0
  %v544 = vadd.f32 %v91, %v543
  %v545 = vpop.f32.mrb[0].mxu0
  %546 = vmatprep.mubr.bf16.mxu0 0
  %547 = vmatmul.mubr.bf16.gmra.mrb[0].mxu0 %v324
  %v548 = vpop.f32.mrb[0].mxu0
  %v549 = vadd.f32 %v91, %v548
  %v550 = vpop.f32.mrb[0].mxu0
  %v551 = vpop.f32.mrb[0].mxu0
  %v552 = vadd.f32 %v91, %v551
  %v553 = vpop.f32.mrb[0].mxu0
  %554 = vmatprep.mubr.bf16.mxu0 0
  %555 = vmatmul.mubr.bf16.gmra.mrb[0].mxu0 %v327
  %v556 = vpop.f32.mrb[0].mxu0
  %v557 = vadd.f32 %v91, %v556
  %v558 = vpop.f32.mrb[0].mxu0
  %v559 = vpop.f32.mrb[0].mxu0
  %v560 = vadd.f32 %v91, %v559
  %v561 = vpop.f32.mrb[0].mxu0
  %562 = vmatprep.mubr.bf16.mxu0 0
  %563 = vmatmul.mubr.bf16.gmra.mrb[0].mxu0 %v330
  %v564 = vpop.f32.mrb[0].mxu0
  %v565 = vadd.f32 %v91, %v564
  %v566 = vpop.f32.mrb[0].mxu0
  %v567 = vpop.f32.mrb[0].mxu0
  %v568 = vadd.f32 %v91, %v567
  %v569 = vpop.f32.mrb[0].mxu0
  %570 = vmatprep.mubr.bf16.mxu0 0
  %571 = vmatmul.mubr.bf16.gmra.mrb[0].mxu0 %v333
  %v572 = vpop.f32.mrb[0].mxu0
  %v573 = vadd.f32 %v91, %v572
  %v574 = vpop.f32.mrb[0].mxu0
  %v575 = vpop.f32.mrb[0].mxu0
  %v576 = vadd.f32 %v91, %v575
  %v577 = vpop.f32.mrb[0].mxu0
  %578 = vmatprep.mubr.bf16.mxu0 0
  %579 = vmatmul.mubr.bf16.gmra.mrb[0].mxu0 %v336
  %v580 = vpop.f32.mrb[0].mxu0
  %v581 = vadd.f32 %v91, %v580
  %v582 = vpop.f32.mrb[0].mxu0
  %v583 = vpop.f32.mrb[0].mxu0
  %v584 = vadd.f32 %v91, %v583
  %v585 = vpop.f32.mrb[0].mxu0
  %586 = vmatprep.mubr.bf16.mxu0 0
  %587 = vmatmul.mubr.bf16.gmra.mrb[0].mxu0 %v339
  %v588 = vpop.f32.mrb[0].mxu0
  %v589 = vadd.f32 %v91, %v588
  %v590 = vpop.f32.mrb[0].mxu0
  %v591 = vpop.f32.mrb[0].mxu0
  %v592 = vadd.f32 %v91, %v591
  %v593 = vpop.f32.mrb[0].mxu0
  %594 = vmatprep.mubr.bf16.mxu0 0
  %595 = vmatmul.mubr.bf16.gmra.mrb[0].mxu0 %v342
  %v596 = vpop.f32.mrb[0].mxu0
  %v597 = vadd.f32 %v91, %v596
  %v598 = vpop.f32.mrb[0].mxu0
  %v599 = vpop.f32.mrb[0].mxu0
  %v600 = vadd.f32 %v91, %v599
  %v601 = vpop.f32.mrb[0].mxu0
  %602 = vmatprep.mubr.bf16.mxu0 0
  %603 = vmatmul.mubr.bf16.gmra.mrb[0].mxu0 %v345
  %v604 = vpop.f32.mrb[0].mxu0
  %v605 = vadd.f32 %v91, %v604
  %v606 = vpop.f32.mrb[0].mxu0
  %v607 = vpop.f32.mrb[0].mxu0
  %v608 = vadd.f32 %v91, %v607
  %v609 = vpop.f32.mrb[0].mxu0
  %610 = vmatprep.mubr.bf16.mxu0 0
  %611 = vmatmul.mubr.bf16.gmra.mrb[0].mxu0 %v348
  %v612 = vpop.f32.mrb[0].mxu0
  %v613 = vadd.f32 %v91, %v612
  %v614 = vpop.f32.mrb[0].mxu0
  %v615 = vpop.f32.mrb[0].mxu0
  %v616 = vadd.f32 %v91, %v615
  %v617 = vpop.f32.mrb[0].mxu0
  %618 = vmatprep.mubr.bf16.mxu0 0
  %619 = vmatmul.mubr.bf16.gmra.mrb[0].mxu0 %v351
  %v620 = vpop.f32.mrb[0].mxu0
  %v621 = vadd.f32 %v91, %v620
  %v622 = vpop.f32.mrb[0].mxu0
  %v623 = vpop.f32.mrb[0].mxu0
  %v624 = vadd.f32 %v91, %v623
  %v625 = vpop.f32.mrb[0].mxu0
  %626 = vmatprep.mubr.bf16.mxu0 0
  %627 = vmatmul.mubr.bf16.gmra.mrb[0].mxu0 %v354
  %v628 = vpop.f32.mrb[0].mxu0
  %v629 = vadd.f32 %v91, %v628
  %v630 = vpop.f32.mrb[0].mxu0
  %v631 = vpop.f32.mrb[0].mxu0
  %v632 = vadd.f32 %v91, %v631
  %v633 = vpop.f32.mrb[0].mxu0
  %634 = vmatprep.mubr.bf16.mxu0 0
  %635 = vmatmul.mubr.bf16.gmra.mrb[0].mxu0 %v357
  %v636 = vpop.f32.mrb[0].mxu0
  %v637 = vadd.f32 %v91, %v636
  %v638 = vpop.f32.mrb[0].mxu0
  %v639 = vpop.f32.mrb[0].mxu0
  %v640 = vadd.f32 %v91, %v639
  %v641 = vpop.f32.mrb[0].mxu0
  %642 = vmatprep.mubr.bf16.mxu0 0
  %643 = vmatmul.mubr.bf16.gmra.mrb[0].mxu0 %v360
  %v644 = vpop.f32.mrb[0].mxu0
  %v645 = vadd.f32 %v91, %v644
  %v646 = vpop.f32.mrb[0].mxu0
  %v647 = vpop.f32.mrb[0].mxu0
  %v648 = vadd.f32 %v91, %v647
  %v649 = vpop.f32.mrb[0].mxu0
  %650 = vdwg.mxu0
  %v651 = vpack.c.bf16 %v400, %v397
  %v652 = vpack.c.bf16 %v408, %v405
  %v653 = vpack.c.bf16 %v416, %v413
  %v654 = vpack.c.bf16 %v424, %v421
  %v655 = vpack.c.bf16 %v432, %v429
  %v656 = vpack.c.bf16 %v440, %v437
  %v657 = vpack.c.bf16 %v448, %v445
  %v658 = vpack.c.bf16 %v456, %v453
  %v659 = vpack.c.bf16 %v464, %v461
  %v660 = vpack.c.bf16 %v472, %v469
  %v661 = vpack.c.bf16 %v480, %v477
  %v662 = vpack.c.bf16 %v488, %v485
  %v663 = vpack.c.bf16 %v496, %v493
  %v664 = vpack.c.bf16 %v504, %v501
  %v665 = vpack.c.bf16 %v512, %v509
  %v666 = vpack.c.bf16 %v520, %v517
  %v667 = vpack.c.bf16 %v528, %v525
  %v668 = vpack.c.bf16 %v536, %v533
  %v669 = vpack.c.bf16 %v544, %v541
  %v670 = vpack.c.bf16 %v552, %v549
  %v671 = vpack.c.bf16 %v560, %v557
  %v672 = vpack.c.bf16 %v568, %v565
  %v673 = vpack.c.bf16 %v576, %v573
  %v674 = vpack.c.bf16 %v584, %v581
  %v675 = vpack.c.bf16 %v592, %v589
  %v676 = vpack.c.bf16 %v600, %v597
  %v677 = vpack.c.bf16 %v608, %v605
  %v678 = vpack.c.bf16 %v616, %v613
  %v679 = vpack.c.bf16 %v624, %v621
  %v680 = vpack.c.bf16 %v632, %v629
  %v681 = vpack.c.bf16 %v640, %v637
  %v682 = vpack.c.bf16 %v648, %v645
  %v715 = vunpack.c.l.b16 %v651
  %v716 = vunpack.c.h.b16 %v651
  %v717 = vunpack.c.l.b16 %v652
  %v718 = vunpack.c.h.b16 %v652
  %v719 = vunpack.c.l.b16 %v653
  %v720 = vunpack.c.h.b16 %v653
  %v721 = vunpack.c.l.b16 %v654
  %v722 = vunpack.c.h.b16 %v654
  %v723 = vunpack.c.l.b16 %v655
  %v724 = vunpack.c.h.b16 %v655
  %v725 = vunpack.c.l.b16 %v656
  %v726 = vunpack.c.h.b16 %v656
  %v727 = vunpack.c.l.b16 %v657
  %v728 = vunpack.c.h.b16 %v657
  %v729 = vunpack.c.l.b16 %v658
  %v730 = vunpack.c.h.b16 %v658
  %v731 = vunpack.c.l.b16 %v659
  %v732 = vunpack.c.h.b16 %v659
  %v733 = vunpack.c.l.b16 %v660
  %v734 = vunpack.c.h.b16 %v660
  %v735 = vunpack.c.l.b16 %v661
  %v736 = vunpack.c.h.b16 %v661
  %v737 = vunpack.c.l.b16 %v662
  %v738 = vunpack.c.h.b16 %v662
  %v739 = vunpack.c.l.b16 %v663
  %v740 = vunpack.c.h.b16 %v663
  %v741 = vunpack.c.l.b16 %v664
  %v742 = vunpack.c.h.b16 %v664
  %v743 = vunpack.c.l.b16 %v665
  %v744 = vunpack.c.h.b16 %v665
  %v745 = vunpack.c.l.b16 %v666
  %v746 = vunpack.c.h.b16 %v666
  %v747 = vunpack.c.l.b16 %v667
  %v748 = vunpack.c.h.b16 %v667
  %v749 = vunpack.c.l.b16 %v668
  %v750 = vunpack.c.h.b16 %v668
  %v751 = vunpack.c.l.b16 %v669
  %v752 = vunpack.c.h.b16 %v669
  %v753 = vunpack.c.l.b16 %v670
  %v754 = vunpack.c.h.b16 %v670
  %v755 = vunpack.c.l.b16 %v671
  %v756 = vunpack.c.h.b16 %v671
  %v757 = vunpack.c.l.b16 %v672
  %v758 = vunpack.c.h.b16 %v672
  %v759 = vunpack.c.l.b16 %v673
  %v760 = vunpack.c.h.b16 %v673
  %v761 = vunpack.c.l.b16 %v674
  %v762 = vunpack.c.h.b16 %v674
  %v763 = vunpack.c.l.b16 %v675
  %v764 = vunpack.c.h.b16 %v675
  %v765 = vunpack.c.l.b16 %v676
  %v766 = vunpack.c.h.b16 %v676
  %v767 = vunpack.c.l.b16 %v677
  %v768 = vunpack.c.h.b16 %v677
  %v769 = vunpack.c.l.b16 %v678
  %v770 = vunpack.c.h.b16 %v678
  %v771 = vunpack.c.l.b16 %v679
  %v772 = vunpack.c.h.b16 %v679
  %v773 = vunpack.c.l.b16 %v680
  %v774 = vunpack.c.h.b16 %v680
  %v775 = vunpack.c.l.b16 %v681
  %v776 = vunpack.c.h.b16 %v681
  %v777 = vunpack.c.l.b16 %v682
  %v778 = vunpack.c.h.b16 %v682
  %v779 = vpack.c.b16 %v715, %v715
  %v780 = vpack.c.b16 %v716, %v716
  %v781 = vpack.c.b16 %v717, %v717
  %v782 = vpack.c.b16 %v718, %v718
  %v783 = vpack.c.b16 %v719, %v719
  %v784 = vpack.c.b16 %v720, %v720
  %v785 = vpack.c.b16 %v721, %v721
  %v786 = vpack.c.b16 %v722, %v722
  %v787 = vpack.c.b16 %v723, %v723
  %v788 = vpack.c.b16 %v724, %v724
  %v789 = vpack.c.b16 %v725, %v725
  %v790 = vpack.c.b16 %v726, %v726
  %v791 = vpack.c.b16 %v727, %v727
  %v792 = vpack.c.b16 %v728, %v728
  %v793 = vpack.c.b16 %v729, %v729
  %v794 = vpack.c.b16 %v730, %v730
  %v795 = vpack.c.b16 %v731, %v731
  %v796 = vpack.c.b16 %v732, %v732
  %v797 = vpack.c.b16 %v733, %v733
  %v798 = vpack.c.b16 %v734, %v734
  %v799 = vpack.c.b16 %v735, %v735
  %v800 = vpack.c.b16 %v736, %v736
  %v801 = vpack.c.b16 %v737, %v737
  %v802 = vpack.c.b16 %v738, %v738
  %v803 = vpack.c.b16 %v739, %v739
  %v804 = vpack.c.b16 %v740, %v740
  %v805 = vpack.c.b16 %v741, %v741
  %v806 = vpack.c.b16 %v742, %v742
  %v807 = vpack.c.b16 %v743, %v743
  %v808 = vpack.c.b16 %v744, %v744
  %v809 = vpack.c.b16 %v745, %v745
  %v810 = vpack.c.b16 %v746, %v746
  %v811 = vpack.c.b16 %v747, %v747
  %v812 = vpack.c.b16 %v748, %v748
  %v813 = vpack.c.b16 %v749, %v749
  %v814 = vpack.c.b16 %v750, %v750
  %v815 = vpack.c.b16 %v751, %v751
  %v816 = vpack.c.b16 %v752, %v752
  %v817 = vpack.c.b16 %v753, %v753
  %v818 = vpack.c.b16 %v754, %v754
  %v819 = vpack.c.b16 %v755, %v755
  %v820 = vpack.c.b16 %v756, %v756
  %v821 = vpack.c.b16 %v757, %v757
  %v822 = vpack.c.b16 %v758, %v758
  %v823 = vpack.c.b16 %v759, %v759
  %v824 = vpack.c.b16 %v760, %v760
  %v825 = vpack.c.b16 %v761, %v761
  %v826 = vpack.c.b16 %v762, %v762
  %v827 = vpack.c.b16 %v763, %v763
  %v828 = vpack.c.b16 %v764, %v764
  %v829 = vpack.c.b16 %v765, %v765
  %v830 = vpack.c.b16 %v766, %v766
  %v831 = vpack.c.b16 %v767, %v767
  %v832 = vpack.c.b16 %v768, %v768
  %v833 = vpack.c.b16 %v769, %v769
  %v834 = vpack.c.b16 %v770, %v770
  %v835 = vpack.c.b16 %v771, %v771
  %v836 = vpack.c.b16 %v772, %v772
  %v837 = vpack.c.b16 %v773, %v773
  %v838 = vpack.c.b16 %v774, %v774
  %v839 = vpack.c.b16 %v775, %v775
  %v840 = vpack.c.b16 %v776, %v776
  %v841 = vpack.c.b16 %v777, %v777
  %v842 = vpack.c.b16 %v778, %v778
  %vm907 = vcmask 257024
  %908 = vst.msk [vmem:[%s3] sm:$0xf] %vm907, %v779
  %909 = vst.msk [vmem:[%s3 + $0x4] sm:$0xf] %vm907, %v780
  %910 = vst.msk [vmem:[%s3 + $0x8] sm:$0xf] %vm907, %v781
  %911 = vst.msk [vmem:[%s3 + $0xc] sm:$0xf] %vm907, %v782
  %912 = vst.msk [vmem:[%s3 + $0x10] sm:$0xf] %vm907, %v783
  %913 = vst.msk [vmem:[%s3 + $0x14] sm:$0xf] %vm907, %v784
  %914 = vst.msk [vmem:[%s3 + $0x18] sm:$0xf] %vm907, %v785
  %915 = vst.msk [vmem:[%s3 + $0x1c] sm:$0xf] %vm907, %v786
  %916 = vst.msk [vmem:[%s3 + $0x20] sm:$0xf] %vm907, %v787
  %917 = vst.msk [vmem:[%s3 + $0x24] sm:$0xf] %vm907, %v788
  %918 = vst.msk [vmem:[%s3 + $0x28] sm:$0xf] %vm907, %v789
  %919 = vst.msk [vmem:[%s3 + $0x2c] sm:$0xf] %vm907, %v790
  %920 = vst.msk [vmem:[%s3 + $0x30] sm:$0xf] %vm907, %v791
  %921 = vst.msk [vmem:[%s3 + $0x34] sm:$0xf] %vm907, %v792
  %922 = vst.msk [vmem:[%s3 + $0x38] sm:$0xf] %vm907, %v793
  %923 = vst.msk [vmem:[%s3 + $0x3c] sm:$0xf] %vm907, %v794
  %924 = vst.msk [vmem:[%s3 + $0x40] sm:$0xf] %vm907, %v795
  %925 = vst.msk [vmem:[%s3 + $0x44] sm:$0xf] %vm907, %v796
  %926 = vst.msk [vmem:[%s3 + $0x48] sm:$0xf] %vm907, %v797
  %927 = vst.msk [vmem:[%s3 + $0x4c] sm:$0xf] %vm907, %v798
  %928 = vst.msk [vmem:[%s3 + $0x50] sm:$0xf] %vm907, %v799
  %929 = vst.msk [vmem:[%s3 + $0x54] sm:$0xf] %vm907, %v800
  %930 = vst.msk [vmem:[%s3 + $0x58] sm:$0xf] %vm907, %v801
  %931 = vst.msk [vmem:[%s3 + $0x5c] sm:$0xf] %vm907, %v802
  %932 = vst.msk [vmem:[%s3 + $0x60] sm:$0xf] %vm907, %v803
  %933 = vst.msk [vmem:[%s3 + $0x64] sm:$0xf] %vm907, %v804
  %934 = vst.msk [vmem:[%s3 + $0x68] sm:$0xf] %vm907, %v805
  %935 = vst.msk [vmem:[%s3 + $0x6c] sm:$0xf] %vm907, %v806
  %936 = vst.msk [vmem:[%s3 + $0x70] sm:$0xf] %vm907, %v807
  %937 = vst.msk [vmem:[%s3 + $0x74] sm:$0xf] %vm907, %v808
  %938 = vst.msk [vmem:[%s3 + $0x78] sm:$0xf] %vm907, %v809
  %939 = vst.msk [vmem:[%s3 + $0x7c] sm:$0xf] %vm907, %v810
  %940 = vst.msk [vmem:[%s3 + $0x80] sm:$0xf] %vm907, %v811
  %941 = vst.msk [vmem:[%s3 + $0x84] sm:$0xf] %vm907, %v812
  %942 = vst.msk [vmem:[%s3 + $0x88] sm:$0xf] %vm907, %v813
  %943 = vst.msk [vmem:[%s3 + $0x8c] sm:$0xf] %vm907, %v814
  %944 = vst.msk [vmem:[%s3 + $0x90] sm:$0xf] %vm907, %v815
  %945 = vst.msk [vmem:[%s3 + $0x94] sm:$0xf] %vm907, %v816
  %946 = vst.msk [vmem:[%s3 + $0x98] sm:$0xf] %vm907, %v817
  %947 = vst.msk [vmem:[%s3 + $0x9c] sm:$0xf] %vm907, %v818
  %948 = vst.msk [vmem:[%s3 + $0xa0] sm:$0xf] %vm907, %v819
  %949 = vst.msk [vmem:[%s3 + $0xa4] sm:$0xf] %vm907, %v820
  %950 = vst.msk [vmem:[%s3 + $0xa8] sm:$0xf] %vm907, %v821
  %951 = vst.msk [vmem:[%s3 + $0xac] sm:$0xf] %vm907, %v822
  %952 = vst.msk [vmem:[%s3 + $0xb0] sm:$0xf] %vm907, %v823
  %953 = vst.msk [vmem:[%s3 + $0xb4] sm:$0xf] %vm907, %v824
  %954 = vst.msk [vmem:[%s3 + $0xb8] sm:$0xf] %vm907, %v825
  %955 = vst.msk [vmem:[%s3 + $0xbc] sm:$0xf] %vm907, %v826
  %956 = vst.msk [vmem:[%s3 + $0xc0] sm:$0xf] %vm907, %v827
  %957 = vst.msk [vmem:[%s3 + $0xc4] sm:$0xf] %vm907, %v828
  %958 = vst.msk [vmem:[%s3 + $0xc8] sm:$0xf] %vm907, %v829
  %959 = vst.msk [vmem:[%s3 + $0xcc] sm:$0xf] %vm907, %v830
  %960 = vst.msk [vmem:[%s3 + $0xd0] sm:$0xf] %vm907, %v831
  %961 = vst.msk [vmem:[%s3 + $0xd4] sm:$0xf] %vm907, %v832
  %962 = vst.msk [vmem:[%s3 + $0xd8] sm:$0xf] %vm907, %v833
  %963 = vst.msk [vmem:[%s3 + $0xdc] sm:$0xf] %vm907, %v834
  %964 = vst.msk [vmem:[%s3 + $0xe0] sm:$0xf] %vm907, %v835
  %965 = vst.msk [vmem:[%s3 + $0xe4] sm:$0xf] %vm907, %v836
  %966 = vst.msk [vmem:[%s3 + $0xe8] sm:$0xf] %vm907, %v837
  %967 = vst.msk [vmem:[%s3 + $0xec] sm:$0xf] %vm907, %v838
  %968 = vst.msk [vmem:[%s3 + $0xf0] sm:$0xf] %vm907, %v839
  %969 = vst.msk [vmem:[%s3 + $0xf4] sm:$0xf] %vm907, %v840
  %970 = vst.msk [vmem:[%s3 + $0xf8] sm:$0xf] %vm907, %v841
  %971 = vst.msk [vmem:[%s3 + $0xfc] sm:$0xf] %vm907, %v842
  %972 = vrot.lane.b32.xlu0 %v779, 96
  %v973 = vpop.permute.xlu0 %972
  %974 = vrot.lane.b32.xlu0 %v780, 96
  %v975 = vpop.permute.xlu0 %974
  %976 = vrot.lane.b32.xlu0 %v781, 96
  %v977 = vpop.permute.xlu0 %976
  %978 = vrot.lane.b32.xlu0 %v782, 96
  %v979 = vpop.permute.xlu0 %978
  %980 = vrot.lane.b32.xlu0 %v783, 96
  %v981 = vpop.permute.xlu0 %980
  %982 = vrot.lane.b32.xlu0 %v784, 96
  %v983 = vpop.permute.xlu0 %982
  %984 = vrot.lane.b32.xlu0 %v785, 96
  %v985 = vpop.permute.xlu0 %984
  %986 = vrot.lane.b32.xlu0 %v786, 96
  %v987 = vpop.permute.xlu0 %986
  %988 = vrot.lane.b32.xlu0 %v787, 96
  %v989 = vpop.permute.xlu0 %988
  %990 = vrot.lane.b32.xlu0 %v788, 96
  %v991 = vpop.permute.xlu0 %990
  %992 = vrot.lane.b32.xlu0 %v789, 96
  %v993 = vpop.permute.xlu0 %992
  %994 = vrot.lane.b32.xlu0 %v790, 96
  %v995 = vpop.permute.xlu0 %994
  %996 = vrot.lane.b32.xlu0 %v791, 96
  %v997 = vpop.permute.xlu0 %996
  %998 = vrot.lane.b32.xlu0 %v792, 96
  %v999 = vpop.permute.xlu0 %998
  %1000 = vrot.lane.b32.xlu0 %v793, 96
  %v1001 = vpop.permute.xlu0 %1000
  %1002 = vrot.lane.b32.xlu0 %v794, 96
  %v1003 = vpop.permute.xlu0 %1002
  %1004 = vrot.lane.b32.xlu0 %v795, 96
  %v1005 = vpop.permute.xlu0 %1004
  %1006 = vrot.lane.b32.xlu0 %v796, 96
  %v1007 = vpop.permute.xlu0 %1006
  %1008 = vrot.lane.b32.xlu0 %v797, 96
  %v1009 = vpop.permute.xlu0 %1008
  %1010 = vrot.lane.b32.xlu0 %v798, 96
  %v1011 = vpop.permute.xlu0 %1010
  %1012 = vrot.lane.b32.xlu0 %v799, 96
  %v1013 = vpop.permute.xlu0 %1012
  %1014 = vrot.lane.b32.xlu0 %v800, 96
  %v1015 = vpop.permute.xlu0 %1014
  %1016 = vrot.lane.b32.xlu0 %v801, 96
  %v1017 = vpop.permute.xlu0 %1016
  %1018 = vrot.lane.b32.xlu0 %v802, 96
  %v1019 = vpop.permute.xlu0 %1018
  %1020 = vrot.lane.b32.xlu0 %v803, 96
  %v1021 = vpop.permute.xlu0 %1020
  %1022 = vrot.lane.b32.xlu0 %v804, 96
  %v1023 = vpop.permute.xlu0 %1022
  %1024 = vrot.lane.b32.xlu0 %v805, 96
  %v1025 = vpop.permute.xlu0 %1024
  %1026 = vrot.lane.b32.xlu0 %v806, 96
  %v1027 = vpop.permute.xlu0 %1026
  %1028 = vrot.lane.b32.xlu0 %v807, 96
  %v1029 = vpop.permute.xlu0 %1028
  %1030 = vrot.lane.b32.xlu0 %v808, 96
  %v1031 = vpop.permute.xlu0 %1030
  %1032 = vrot.lane.b32.xlu0 %v809, 96
  %v1033 = vpop.permute.xlu0 %1032
  %1034 = vrot.lane.b32.xlu0 %v810, 96
  %v1035 = vpop.permute.xlu0 %1034
  %1036 = vrot.lane.b32.xlu0 %v811, 96
  %v1037 = vpop.permute.xlu0 %1036
  %1038 = vrot.lane.b32.xlu0 %v812, 96
  %v1039 = vpop.permute.xlu0 %1038
  %1040 = vrot.lane.b32.xlu0 %v813, 96
  %v1041 = vpop.permute.xlu0 %1040
  %1042 = vrot.lane.b32.xlu0 %v814, 96
  %v1043 = vpop.permute.xlu0 %1042
  %1044 = vrot.lane.b32.xlu0 %v815, 96
  %v1045 = vpop.permute.xlu0 %1044
  %1046 = vrot.lane.b32.xlu0 %v816, 96
  %v1047 = vpop.permute.xlu0 %1046
  %1048 = vrot.lane.b32.xlu0 %v817, 96
  %v1049 = vpop.permute.xlu0 %1048
  %1050 = vrot.lane.b32.xlu0 %v818, 96
  %v1051 = vpop.permute.xlu0 %1050
  %1052 = vrot.lane.b32.xlu0 %v819, 96
  %v1053 = vpop.permute.xlu0 %1052
  %1054 = vrot.lane.b32.xlu0 %v820, 96
  %v1055 = vpop.permute.xlu0 %1054
  %1056 = vrot.lane.b32.xlu0 %v821, 96
  %v1057 = vpop.permute.xlu0 %1056
  %1058 = vrot.lane.b32.xlu0 %v822, 96
  %v1059 = vpop.permute.xlu0 %1058
  %1060 = vrot.lane.b32.xlu0 %v823, 96
  %v1061 = vpop.permute.xlu0 %1060
  %1062 = vrot.lane.b32.xlu0 %v824, 96
  %v1063 = vpop.permute.xlu0 %1062
  %1064 = vrot.lane.b32.xlu0 %v825, 96
  %v1065 = vpop.permute.xlu0 %1064
  %1066 = vrot.lane.b32.xlu0 %v826, 96
  %v1067 = vpop.permute.xlu0 %1066
  %1068 = vrot.lane.b32.xlu0 %v827, 96
  %v1069 = vpop.permute.xlu0 %1068
  %1070 = vrot.lane.b32.xlu0 %v828, 96
  %v1071 = vpop.permute.xlu0 %1070
  %1072 = vrot.lane.b32.xlu0 %v829, 96
  %v1073 = vpop.permute.xlu0 %1072
  %1074 = vrot.lane.b32.xlu0 %v830, 96
  %v1075 = vpop.permute.xlu0 %1074
  %1076 = vrot.lane.b32.xlu0 %v831, 96
  %v1077 = vpop.permute.xlu0 %1076
  %1078 = vrot.lane.b32.xlu0 %v832, 96
  %v1079 = vpop.permute.xlu0 %1078
  %1080 = vrot.lane.b32.xlu0 %v833, 96
  %v1081 = vpop.permute.xlu0 %1080
  %1082 = vrot.lane.b32.xlu0 %v834, 96
  %v1083 = vpop.permute.xlu0 %1082
  %1084 = vrot.lane.b32.xlu0 %v835, 96
  %v1085 = vpop.permute.xlu0 %1084
  %1086 = vrot.lane.b32.xlu0 %v836, 96
  %v1087 = vpop.permute.xlu0 %1086
  %1088 = vrot.lane.b32.xlu0 %v837, 96
  %v1089 = vpop.permute.xlu0 %1088
  %1090 = vrot.lane.b32.xlu0 %v838, 96
  %v1091 = vpop.permute.xlu0 %1090
  %1092 = vrot.lane.b32.xlu0 %v839, 96
  %v1093 = vpop.permute.xlu0 %1092
  %1094 = vrot.lane.b32.xlu0 %v840, 96
  %v1095 = vpop.permute.xlu0 %1094
  %1096 = vrot.lane.b32.xlu0 %v841, 96
  %v1097 = vpop.permute.xlu0 %1096
  %1098 = vrot.lane.b32.xlu0 %v842, 96
  %v1099 = vpop.permute.xlu0 %1098
  %1164 = vst.msk [vmem:[%s4] sm:$0xf] %vm907, %v973
  %1165 = vst.msk [vmem:[%s4 + $0x4] sm:$0xf] %vm907, %v975
  %1166 = vst.msk [vmem:[%s4 + $0x8] sm:$0xf] %vm907, %v977
  %1167 = vst.msk [vmem:[%s4 + $0xc] sm:$0xf] %vm907, %v979
  %1168 = vst.msk [vmem:[%s4 + $0x10] sm:$0xf] %vm907, %v981
  %1169 = vst.msk [vmem:[%s4 + $0x14] sm:$0xf] %vm907, %v983
  %1170 = vst.msk [vmem:[%s4 + $0x18] sm:$0xf] %vm907, %v985
  %1171 = vst.msk [vmem:[%s4 + $0x1c] sm:$0xf] %vm907, %v987
  %1172 = vst.msk [vmem:[%s4 + $0x20] sm:$0xf] %vm907, %v989
  %1173 = vst.msk [vmem:[%s4 + $0x24] sm:$0xf] %vm907, %v991
  %1174 = vst.msk [vmem:[%s4 + $0x28] sm:$0xf] %vm907, %v993
  %1175 = vst.msk [vmem:[%s4 + $0x2c] sm:$0xf] %vm907, %v995
  %1176 = vst.msk [vmem:[%s4 + $0x30] sm:$0xf] %vm907, %v997
  %1177 = vst.msk [vmem:[%s4 + $0x34] sm:$0xf] %vm907, %v999
  %1178 = vst.msk [vmem:[%s4 + $0x38] sm:$0xf] %vm907, %v1001
  %1179 = vst.msk [vmem:[%s4 + $0x3c] sm:$0xf] %vm907, %v1003
  %1180 = vst.msk [vmem:[%s4 + $0x40] sm:$0xf] %vm907, %v1005
  %1181 = vst.msk [vmem:[%s4 + $0x44] sm:$0xf] %vm907, %v1007
  %1182 = vst.msk [vmem:[%s4 + $0x48] sm:$0xf] %vm907, %v1009
  %1183 = vst.msk [vmem:[%s4 + $0x4c] sm:$0xf] %vm907, %v1011
  %1184 = vst.msk [vmem:[%s4 + $0x50] sm:$0xf] %vm907, %v1013
  %1185 = vst.msk [vmem:[%s4 + $0x54] sm:$0xf] %vm907, %v1015
  %1186 = vst.msk [vmem:[%s4 + $0x58] sm:$0xf] %vm907, %v1017
  %1187 = vst.msk [vmem:[%s4 + $0x5c] sm:$0xf] %vm907, %v1019
  %1188 = vst.msk [vmem:[%s4 + $0x60] sm:$0xf] %vm907, %v1021
  %1189 = vst.msk [vmem:[%s4 + $0x64] sm:$0xf] %vm907, %v1023
  %1190 = vst.msk [vmem:[%s4 + $0x68] sm:$0xf] %vm907, %v1025
  %1191 = vst.msk [vmem:[%s4 + $0x6c] sm:$0xf] %vm907, %v1027
  %1192 = vst.msk [vmem:[%s4 + $0x70] sm:$0xf] %vm907, %v1029
  %1193 = vst.msk [vmem:[%s4 + $0x74] sm:$0xf] %vm907, %v1031
  %1194 = vst.msk [vmem:[%s4 + $0x78] sm:$0xf] %vm907, %v1033
  %1195 = vst.msk [vmem:[%s4 + $0x7c] sm:$0xf] %vm907, %v1035
  %1196 = vst.msk [vmem:[%s4 + $0x80] sm:$0xf] %vm907, %v1037
  %1197 = vst.msk [vmem:[%s4 + $0x84] sm:$0xf] %vm907, %v1039
  %1198 = vst.msk [vmem:[%s4 + $0x88] sm:$0xf] %vm907, %v1041
  %1199 = vst.msk [vmem:[%s4 + $0x8c] sm:$0xf] %vm907, %v1043
  %1200 = vst.msk [vmem:[%s4 + $0x90] sm:$0xf] %vm907, %v1045
  %1201 = vst.msk [vmem:[%s4 + $0x94] sm:$0xf] %vm907, %v1047
  %1202 = vst.msk [vmem:[%s4 + $0x98] sm:$0xf] %vm907, %v1049
  %1203 = vst.msk [vmem:[%s4 + $0x9c] sm:$0xf] %vm907, %v1051
  %1204 = vst.msk [vmem:[%s4 + $0xa0] sm:$0xf] %vm907, %v1053
  %1205 = vst.msk [vmem:[%s4 + $0xa4] sm:$0xf] %vm907, %v1055
  %1206 = vst.msk [vmem:[%s4 + $0xa8] sm:$0xf] %vm907, %v1057
  %1207 = vst.msk [vmem:[%s4 + $0xac] sm:$0xf] %vm907, %v1059
  %1208 = vst.msk [vmem:[%s4 + $0xb0] sm:$0xf] %vm907, %v1061
  %1209 = vst.msk [vmem:[%s4 + $0xb4] sm:$0xf] %vm907, %v1063
  %1210 = vst.msk [vmem:[%s4 + $0xb8] sm:$0xf] %vm907, %v1065
  %1211 = vst.msk [vmem:[%s4 + $0xbc] sm:$0xf] %vm907, %v1067
  %1212 = vst.msk [vmem:[%s4 + $0xc0] sm:$0xf] %vm907, %v1069
  %1213 = vst.msk [vmem:[%s4 + $0xc4] sm:$0xf] %vm907, %v1071
  %1214 = vst.msk [vmem:[%s4 + $0xc8] sm:$0xf] %vm907, %v1073
  %1215 = vst.msk [vmem:[%s4 + $0xcc] sm:$0xf] %vm907, %v1075
  %1216 = vst.msk [vmem:[%s4 + $0xd0] sm:$0xf] %vm907, %v1077
  %1217 = vst.msk [vmem:[%s4 + $0xd4] sm:$0xf] %vm907, %v1079
  %1218 = vst.msk [vmem:[%s4 + $0xd8] sm:$0xf] %vm907, %v1081
  %1219 = vst.msk [vmem:[%s4 + $0xdc] sm:$0xf] %vm907, %v1083
  %1220 = vst.msk [vmem:[%s4 + $0xe0] sm:$0xf] %vm907, %v1085
  %1221 = vst.msk [vmem:[%s4 + $0xe4] sm:$0xf] %vm907, %v1087
  %1222 = vst.msk [vmem:[%s4 + $0xe8] sm:$0xf] %vm907, %v1089
  %1223 = vst.msk [vmem:[%s4 + $0xec] sm:$0xf] %vm907, %v1091
  %1224 = vst.msk [vmem:[%s4 + $0xf0] sm:$0xf] %vm907, %v1093
  %1225 = vst.msk [vmem:[%s4 + $0xf4] sm:$0xf] %vm907, %v1095
  %1226 = vst.msk [vmem:[%s4 + $0xf8] sm:$0xf] %vm907, %v1097
  %1227 = vst.msk [vmem:[%s4 + $0xfc] sm:$0xf] %vm907, %v1099
  %1228 = vrot.lane.b32.xlu0 %v779, 64
  %v1229 = vpop.permute.xlu0 %1228
  %1230 = vrot.lane.b32.xlu0 %v780, 64
  %v1231 = vpop.permute.xlu0 %1230
  %1232 = vrot.lane.b32.xlu0 %v781, 64
  %v1233 = vpop.permute.xlu0 %1232
  %1234 = vrot.lane.b32.xlu0 %v782, 64
  %v1235 = vpop.permute.xlu0 %1234
  %1236 = vrot.lane.b32.xlu0 %v783, 64
  %v1237 = vpop.permute.xlu0 %1236
  %1238 = vrot.lane.b32.xlu0 %v784, 64
  %v1239 = vpop.permute.xlu0 %1238
  %1240 = vrot.lane.b32.xlu0 %v785, 64
  %v1241 = vpop.permute.xlu0 %1240
  %1242 = vrot.lane.b32.xlu0 %v786, 64
  %v1243 = vpop.permute.xlu0 %1242
  %1244 = vrot.lane.b32.xlu0 %v787, 64
  %v1245 = vpop.permute.xlu0 %1244
  %1246 = vrot.lane.b32.xlu0 %v788, 64
  %v1247 = vpop.permute.xlu0 %1246
  %1248 = vrot.lane.b32.xlu0 %v789, 64
  %v1249 = vpop.permute.xlu0 %1248
  %1250 = vrot.lane.b32.xlu0 %v790, 64
  %v1251 = vpop.permute.xlu0 %1250
  %1252 = vrot.lane.b32.xlu0 %v791, 64
  %v1253 = vpop.permute.xlu0 %1252
  %1254 = vrot.lane.b32.xlu0 %v792, 64
  %v1255 = vpop.permute.xlu0 %1254
  %1256 = vrot.lane.b32.xlu0 %v793, 64
  %v1257 = vpop.permute.xlu0 %1256
  %1258 = vrot.lane.b32.xlu0 %v794, 64
  %v1259 = vpop.permute.xlu0 %1258
  %1260 = vrot.lane.b32.xlu0 %v795, 64
  %v1261 = vpop.permute.xlu0 %1260
  %1262 = vrot.lane.b32.xlu0 %v796, 64
  %v1263 = vpop.permute.xlu0 %1262
  %1264 = vrot.lane.b32.xlu0 %v797, 64
  %v1265 = vpop.permute.xlu0 %1264
  %1266 = vrot.lane.b32.xlu0 %v798, 64
  %v1267 = vpop.permute.xlu0 %1266
  %1268 = vrot.lane.b32.xlu0 %v799, 64
  %v1269 = vpop.permute.xlu0 %1268
  %1270 = vrot.lane.b32.xlu0 %v800, 64
  %v1271 = vpop.permute.xlu0 %1270
  %1272 = vrot.lane.b32.xlu0 %v801, 64
  %v1273 = vpop.permute.xlu0 %1272
  %1274 = vrot.lane.b32.xlu0 %v802, 64
  %v1275 = vpop.permute.xlu0 %1274
  %1276 = vrot.lane.b32.xlu0 %v803, 64
  %v1277 = vpop.permute.xlu0 %1276
  %1278 = vrot.lane.b32.xlu0 %v804, 64
  %v1279 = vpop.permute.xlu0 %1278
  %1280 = vrot.lane.b32.xlu0 %v805, 64
  %v1281 = vpop.permute.xlu0 %1280
  %1282 = vrot.lane.b32.xlu0 %v806, 64
  %v1283 = vpop.permute.xlu0 %1282
  %1284 = vrot.lane.b32.xlu0 %v807, 64
  %v1285 = vpop.permute.xlu0 %1284
  %1286 = vrot.lane.b32.xlu0 %v808, 64
  %v1287 = vpop.permute.xlu0 %1286
  %1288 = vrot.lane.b32.xlu0 %v809, 64
  %v1289 = vpop.permute.xlu0 %1288
  %1290 = vrot.lane.b32.xlu0 %v810, 64
  %v1291 = vpop.permute.xlu0 %1290
  %1292 = vrot.lane.b32.xlu0 %v811, 64
  %v1293 = vpop.permute.xlu0 %1292
  %1294 = vrot.lane.b32.xlu0 %v812, 64
  %v1295 = vpop.permute.xlu0 %1294
  %1296 = vrot.lane.b32.xlu0 %v813, 64
  %v1297 = vpop.permute.xlu0 %1296
  %1298 = vrot.lane.b32.xlu0 %v814, 64
  %v1299 = vpop.permute.xlu0 %1298
  %1300 = vrot.lane.b32.xlu0 %v815, 64
  %v1301 = vpop.permute.xlu0 %1300
  %1302 = vrot.lane.b32.xlu0 %v816, 64
  %v1303 = vpop.permute.xlu0 %1302
  %1304 = vrot.lane.b32.xlu0 %v817, 64
  %v1305 = vpop.permute.xlu0 %1304
  %1306 = vrot.lane.b32.xlu0 %v818, 64
  %v1307 = vpop.permute.xlu0 %1306
  %1308 = vrot.lane.b32.xlu0 %v819, 64
  %v1309 = vpop.permute.xlu0 %1308
  %1310 = vrot.lane.b32.xlu0 %v820, 64
  %v1311 = vpop.permute.xlu0 %1310
  %1312 = vrot.lane.b32.xlu0 %v821, 64
  %v1313 = vpop.permute.xlu0 %1312
  %1314 = vrot.lane.b32.xlu0 %v822, 64
  %v1315 = vpop.permute.xlu0 %1314
  %1316 = vrot.lane.b32.xlu0 %v823, 64
  %v1317 = vpop.permute.xlu0 %1316
  %1318 = vrot.lane.b32.xlu0 %v824, 64
  %v1319 = vpop.permute.xlu0 %1318
  %1320 = vrot.lane.b32.xlu0 %v825, 64
  %v1321 = vpop.permute.xlu0 %1320
  %1322 = vrot.lane.b32.xlu0 %v826, 64
  %v1323 = vpop.permute.xlu0 %1322
  %1324 = vrot.lane.b32.xlu0 %v827, 64
  %v1325 = vpop.permute.xlu0 %1324
  %1326 = vrot.lane.b32.xlu0 %v828, 64
  %v1327 = vpop.permute.xlu0 %1326
  %1328 = vrot.lane.b32.xlu0 %v829, 64
  %v1329 = vpop.permute.xlu0 %1328
  %1330 = vrot.lane.b32.xlu0 %v830, 64
  %v1331 = vpop.permute.xlu0 %1330
  %1332 = vrot.lane.b32.xlu0 %v831, 64
  %v1333 = vpop.permute.xlu0 %1332
  %1334 = vrot.lane.b32.xlu0 %v832, 64
  %v1335 = vpop.permute.xlu0 %1334
  %1336 = vrot.lane.b32.xlu0 %v833, 64
  %v1337 = vpop.permute.xlu0 %1336
  %1338 = vrot.lane.b32.xlu0 %v834, 64
  %v1339 = vpop.permute.xlu0 %1338
  %1340 = vrot.lane.b32.xlu0 %v835, 64
  %v1341 = vpop.permute.xlu0 %1340
  %1342 = vrot.lane.b32.xlu0 %v836, 64
  %v1343 = vpop.permute.xlu0 %1342
  %1344 = vrot.lane.b32.xlu0 %v837, 64
  %v1345 = vpop.permute.xlu0 %1344
  %1346 = vrot.lane.b32.xlu0 %v838, 64
  %v1347 = vpop.permute.xlu0 %1346
  %1348 = vrot.lane.b32.xlu0 %v839, 64
  %v1349 = vpop.permute.xlu0 %1348
  %1350 = vrot.lane.b32.xlu0 %v840, 64
  %v1351 = vpop.permute.xlu0 %1350
  %1352 = vrot.lane.b32.xlu0 %v841, 64
  %v1353 = vpop.permute.xlu0 %1352
  %1354 = vrot.lane.b32.xlu0 %v842, 64
  %v1355 = vpop.permute.xlu0 %1354
  %1420 = vst.msk [vmem:[%s5] sm:$0xf] %vm907, %v1229
  %1421 = vst.msk [vmem:[%s5 + $0x4] sm:$0xf] %vm907, %v1231
  %1422 = vst.msk [vmem:[%s5 + $0x8] sm:$0xf] %vm907, %v1233
  %1423 = vst.msk [vmem:[%s5 + $0xc] sm:$0xf] %vm907, %v1235
  %1424 = vst.msk [vmem:[%s5 + $0x10] sm:$0xf] %vm907, %v1237
  %1425 = vst.msk [vmem:[%s5 + $0x14] sm:$0xf] %vm907, %v1239
  %1426 = vst.msk [vmem:[%s5 + $0x18] sm:$0xf] %vm907, %v1241
  %1427 = vst.msk [vmem:[%s5 + $0x1c] sm:$0xf] %vm907, %v1243
  %1428 = vst.msk [vmem:[%s5 + $0x20] sm:$0xf] %vm907, %v1245
  %1429 = vst.msk [vmem:[%s5 + $0x24] sm:$0xf] %vm907, %v1247
  %1430 = vst.msk [vmem:[%s5 + $0x28] sm:$0xf] %vm907, %v1249
  %1431 = vst.msk [vmem:[%s5 + $0x2c] sm:$0xf] %vm907, %v1251
  %1432 = vst.msk [vmem:[%s5 + $0x30] sm:$0xf] %vm907, %v1253
  %1433 = vst.msk [vmem:[%s5 + $0x34] sm:$0xf] %vm907, %v1255
  %1434 = vst.msk [vmem:[%s5 + $0x38] sm:$0xf] %vm907, %v1257
  %1435 = vst.msk [vmem:[%s5 + $0x3c] sm:$0xf] %vm907, %v1259
  %1436 = vst.msk [vmem:[%s5 + $0x40] sm:$0xf] %vm907, %v1261
  %1437 = vst.msk [vmem:[%s5 + $0x44] sm:$0xf] %vm907, %v1263
  %1438 = vst.msk [vmem:[%s5 + $0x48] sm:$0xf] %vm907, %v1265
  %1439 = vst.msk [vmem:[%s5 + $0x4c] sm:$0xf] %vm907, %v1267
  %1440 = vst.msk [vmem:[%s5 + $0x50] sm:$0xf] %vm907, %v1269
  %1441 = vst.msk [vmem:[%s5 + $0x54] sm:$0xf] %vm907, %v1271
  %1442 = vst.msk [vmem:[%s5 + $0x58] sm:$0xf] %vm907, %v1273
  %1443 = vst.msk [vmem:[%s5 + $0x5c] sm:$0xf] %vm907, %v1275
  %1444 = vst.msk [vmem:[%s5 + $0x60] sm:$0xf] %vm907, %v1277
  %1445 = vst.msk [vmem:[%s5 + $0x64] sm:$0xf] %vm907, %v1279
  %1446 = vst.msk [vmem:[%s5 + $0x68] sm:$0xf] %vm907, %v1281
  %1447 = vst.msk [vmem:[%s5 + $0x6c] sm:$0xf] %vm907, %v1283
  %1448 = vst.msk [vmem:[%s5 + $0x70] sm:$0xf] %vm907, %v1285
  %1449 = vst.msk [vmem:[%s5 + $0x74] sm:$0xf] %vm907, %v1287
  %1450 = vst.msk [vmem:[%s5 + $0x78] sm:$0xf] %vm907, %v1289
  %1451 = vst.msk [vmem:[%s5 + $0x7c] sm:$0xf] %vm907, %v1291
  %1452 = vst.msk [vmem:[%s5 + $0x80] sm:$0xf] %vm907, %v1293
  %1453 = vst.msk [vmem:[%s5 + $0x84] sm:$0xf] %vm907, %v1295
  %1454 = vst.msk [vmem:[%s5 + $0x88] sm:$0xf] %vm907, %v1297
  %1455 = vst.msk [vmem:[%s5 + $0x8c] sm:$0xf] %vm907, %v1299
  %1456 = vst.msk [vmem:[%s5 + $0x90] sm:$0xf] %vm907, %v1301
  %1457 = vst.msk [vmem:[%s5 + $0x94] sm:$0xf] %vm907, %v1303
  %1458 = vst.msk [vmem:[%s5 + $0x98] sm:$0xf] %vm907, %v1305
  %1459 = vst.msk [vmem:[%s5 + $0x9c] sm:$0xf] %vm907, %v1307
  %1460 = vst.msk [vmem:[%s5 + $0xa0] sm:$0xf] %vm907, %v1309
  %1461 = vst.msk [vmem:[%s5 + $0xa4] sm:$0xf] %vm907, %v1311
  %1462 = vst.msk [vmem:[%s5 + $0xa8] sm:$0xf] %vm907, %v1313
  %1463 = vst.msk [vmem:[%s5 + $0xac] sm:$0xf] %vm907, %v1315
  %1464 = vst.msk [vmem:[%s5 + $0xb0] sm:$0xf] %vm907, %v1317
  %1465 = vst.msk [vmem:[%s5 + $0xb4] sm:$0xf] %vm907, %v1319
  %1466 = vst.msk [vmem:[%s5 + $0xb8] sm:$0xf] %vm907, %v1321
  %1467 = vst.msk [vmem:[%s5 + $0xbc] sm:$0xf] %vm907, %v1323
  %1468 = vst.msk [vmem:[%s5 + $0xc0] sm:$0xf] %vm907, %v1325
  %1469 = vst.msk [vmem:[%s5 + $0xc4] sm:$0xf] %vm907, %v1327
  %1470 = vst.msk [vmem:[%s5 + $0xc8] sm:$0xf] %vm907, %v1329
  %1471 = vst.msk [vmem:[%s5 + $0xcc] sm:$0xf] %vm907, %v1331
  %1472 = vst.msk [vmem:[%s5 + $0xd0] sm:$0xf] %vm907, %v1333
  %1473 = vst.msk [vmem:[%s5 + $0xd4] sm:$0xf] %vm907, %v1335
  %1474 = vst.msk [vmem:[%s5 + $0xd8] sm:$0xf] %vm907, %v1337
  %1475 = vst.msk [vmem:[%s5 + $0xdc] sm:$0xf] %vm907, %v1339
  %1476 = vst.msk [vmem:[%s5 + $0xe0] sm:$0xf] %vm907, %v1341
  %1477 = vst.msk [vmem:[%s5 + $0xe4] sm:$0xf] %vm907, %v1343
  %1478 = vst.msk [vmem:[%s5 + $0xe8] sm:$0xf] %vm907, %v1345
  %1479 = vst.msk [vmem:[%s5 + $0xec] sm:$0xf] %vm907, %v1347
  %1480 = vst.msk [vmem:[%s5 + $0xf0] sm:$0xf] %vm907, %v1349
  %1481 = vst.msk [vmem:[%s5 + $0xf4] sm:$0xf] %vm907, %v1351
  %1482 = vst.msk [vmem:[%s5 + $0xf8] sm:$0xf] %vm907, %v1353
  %1483 = vst.msk [vmem:[%s5 + $0xfc] sm:$0xf] %vm907, %v1355
  // Predicated region
  $region14: #{tpu_custom_call.1} parent=0 // pred_check
    _
  $region15: #{tpu_custom_call.1} parent=0 // pred_check_branch
    %1485 = sbr.rel (0) target = $region17
  $region16: #{tpu_custom_call.1} parent=0 // pred_region
    _
  $region17: #{tpu_custom_call.1} parent=0 // pred_fallthru
    _
  // Predicated region
  $region18: #{tpu_custom_call.1} parent=0 // pred_check
    _
  $region19: #{tpu_custom_call.1} parent=0 // pred_check_branch
    %1487 = sbr.rel (0) target = $region21
  $region20: #{tpu_custom_call.1} parent=0 // pred_region
    _
  $region21: #{tpu_custom_call.1} parent=0 // pred_fallthru
    _
  // Predicated region
  $region22: #{tpu_custom_call.1} parent=0 // pred_check
    _
  $region23: #{tpu_custom_call.1} parent=0 // pred_check_branch
    %1489 = sbr.rel (0) target = $region25
  $region24: #{tpu_custom_call.1} parent=0 // pred_region
    _
  $region25: #{tpu_custom_call.1} parent=0 // pred_fallthru
    _
  // Predicated region
  $region26: #{tpu_custom_call.1} parent=0 // pred_check
    _
  $region27: #{tpu_custom_call.1} parent=0 // pred_check_branch
    %1491 = sbr.rel (0) target = $region29
  $region28: #{tpu_custom_call.1} parent=0 // pred_region
    _
  $region29: #{tpu_custom_call.1} parent=0 // pred_fallthru
    _
  // Predicated region
  $region30: #{tpu_custom_call.1} parent=0 // pred_check
    _
  $region31: #{tpu_custom_call.1} parent=0 // pred_check_branch
    %1493 = sbr.rel (0) target = $region33
  $region32: #{tpu_custom_call.1} parent=0 // pred_region
    _
  $region33: #{tpu_custom_call.1} parent=0 // pred_fallthru
    _
  // Predicated region
  $region34: #{tpu_custom_call.1} parent=0 // pred_check
    _
  $region35: #{tpu_custom_call.1} parent=0 // pred_check_branch
    %1495 = sbr.rel (0) target = $region37
  $region36: #{tpu_custom_call.1} parent=0 // pred_region
    _
  $region37: #{tpu_custom_call.1} parent=0 // pred_fallthru
    _

// kernel: tpu_custom_call.1
$region0: #{tpu_custom_call.1}
  #allocation0 [shape = 'u32[]', space=smem, size = 0x4, offset = 0x4, fixed_abs, tag = 'smem constant byte address 0x4 - core index']
  #allocation1 [shape = 'u32[144,128]{1,0:T(1,128)}', space=vmem, size = 0x12000, scoped, tag = 'internal scratch']
  %s0 = inlined_call_operand.vmem [shape: bf16[512,32], index: 0, kind: input, shape index: {}]
  %s1 = inlined_call_operand.vmem [shape: bf16[32,96], index: 1, kind: input, shape index: {}]
  %s2 = inlined_call_operand.vmem [shape: f32[1,96], index: 2, kind: input, shape index: {}]
  %s3 = inlined_call_operand.vmem [shape: bf16[512,32], index: 3, kind: output, shape index: {0}]
  %s4 = inlined_call_operand.vmem [shape: bf16[512,32], index: 4, kind: output, shape index: {1}]
  %s5 = inlined_call_operand.vmem [shape: bf16[512,32], index: 5, kind: output, shape index: {2}]
  %6 = xla_tuple %s3, %s4, %s5
  %s7 = sld [smem:[#allocation0]]
  $region38: #{tpu_custom_call.1} parent=0
    _
  %s9 = ssub.s32 1, %s7
  %s10 = scalar_select 0, %s9, %s7
  // Predicated region
  $region2: #{tpu_custom_call.1} parent=0 // pred_check
    _
  $region3: #{tpu_custom_call.1} parent=0 // pred_check_branch
    %12 = sbr.rel (0) target = $region5
  $region4: #{tpu_custom_call.1} parent=0 // pred_region
    _
  $region5: #{tpu_custom_call.1} parent=0 // pred_fallthru
    _
  // Predicated region
  $region6: #{tpu_custom_call.1} parent=0 // pred_check
    _
  $region7: #{tpu_custom_call.1} parent=0 // pred_check_branch
    %14 = sbr.rel (0) target = $region9
  $region8: #{tpu_custom_call.1} parent=0 // pred_region
    _
  $region9: #{tpu_custom_call.1} parent=0 // pred_fallthru
    _
  // Predicated region
  $region10: #{tpu_custom_call.1} parent=0 // pred_check
    _
  $region11: #{tpu_custom_call.1} parent=0 // pred_check_branch
    %16 = sbr.rel (0) target = $region13
  $region12: #{tpu_custom_call.1} parent=0 // pred_region
    _
  $region13: #{tpu_custom_call.1} parent=0 // pred_fallthru
    _
  %v18 = vld [vmem:[%s0] sm:$0xf]
  %v19 = vld [vmem:[%s0 + $0x4] sm:$0xf]
  %v20 = vld [vmem:[%s0 + $0x8] sm:$0xf]
  %v21 = vld [vmem:[%s0 + $0xc] sm:$0xf]
  %v22 = vld [vmem:[%s0 + $0x10] sm:$0xf]
  %v23 = vld [vmem:[%s0 + $0x14] sm:$0xf]
  %v24 = vld [vmem:[%s0 + $0x18] sm:$0xf]
  %v25 = vld [vmem:[%s0 + $0x1c] sm:$0xf]
  %v26 = vld [vmem:[%s0 + $0x20] sm:$0xf]
  %v27 = vld [vmem:[%s0 + $0x24] sm:$0xf]
  %v28 = vld [vmem:[%s0 + $0x28] sm:$0xf]
  %v29 = vld [vmem:[%s0 + $0x2c] sm:$0xf]
  %v30 = vld [vmem:[%s0 + $0x30] sm:$0xf]
  %v31 = vld [vmem:[%s0 + $0x34] sm:$0xf]
  %v32 = vld [vmem:[%s0 + $0x38] sm:$0xf]
  %v33 = vld [vmem:[%s0 + $0x3c] sm:$0xf]
  %v34 = vld [vmem:[%s0 + $0x40] sm:$0xf]
  %v35 = vld [vmem:[%s0 + $0x44] sm:$0xf]
  %v36 = vld [vmem:[%s0 + $0x48] sm:$0xf]
  %v37 = vld [vmem:[%s0 + $0x4c] sm:$0xf]
  %v38 = vld [vmem:[%s0 + $0x50] sm:$0xf]
  %v39 = vld [vmem:[%s0 + $0x54] sm:$0xf]
  %v40 = vld [vmem:[%s0 + $0x58] sm:$0xf]
  %v41 = vld [vmem:[%s0 + $0x5c] sm:$0xf]
  %v42 = vld [vmem:[%s0 + $0x60] sm:$0xf]
  %v43 = vld [vmem:[%s0 + $0x64] sm:$0xf]
  %v44 = vld [vmem:[%s0 + $0x68] sm:$0xf]
  %v45 = vld [vmem:[%s0 + $0x6c] sm:$0xf]
  %v46 = vld [vmem:[%s0 + $0x70] sm:$0xf]
  %v47 = vld [vmem:[%s0 + $0x74] sm:$0xf]
  %v48 = vld [vmem:[%s0 + $0x78] sm:$0xf]
  %v49 = vld [vmem:[%s0 + $0x7c] sm:$0xf]
  %v50 = vld [vmem:[%s0 + $0x80] sm:$0xf]
  %v51 = vld [vmem:[%s0 + $0x84] sm:$0xf]
  %v52 = vld [vmem:[%s0 + $0x88] sm:$0xf]
  %v53 = vld [vmem:[%s0 + $0x8c] sm:$0xf]
  %v54 = vld [vmem:[%s0 + $0x90] sm:$0xf]
  %v55 = vld [vmem:[%s0 + $0x94] sm:$0xf]
  %v56 = vld [vmem:[%s0 + $0x98] sm:$0xf]
  %v57 = vld [vmem:[%s0 + $0x9c] sm:$0xf]
  %v58 = vld [vmem:[%s0 + $0xa0] sm:$0xf]
  %v59 = vld [vmem:[%s0 + $0xa4] sm:$0xf]
  %v60 = vld [vmem:[%s0 + $0xa8] sm:$0xf]
  %v61 = vld [vmem:[%s0 + $0xac] sm:$0xf]
  %v62 = vld [vmem:[%s0 + $0xb0] sm:$0xf]
  %v63 = vld [vmem:[%s0 + $0xb4] sm:$0xf]
  %v64 = vld [vmem:[%s0 + $0xb8] sm:$0xf]
  %v65 = vld [vmem:[%s0 + $0xbc] sm:$0xf]
  %v66 = vld [vmem:[%s0 + $0xc0] sm:$0xf]
  %v67 = vld [vmem:[%s0 + $0xc4] sm:$0xf]
  %v68 = vld [vmem:[%s0 + $0xc8] sm:$0xf]
  %v69 = vld [vmem:[%s0 + $0xcc] sm:$0xf]
  %v70 = vld [vmem:[%s0 + $0xd0] sm:$0xf]
  %v71 = vld [vmem:[%s0 + $0xd4] sm:$0xf]
  %v72 = vld [vmem:[%s0 + $0xd8] sm:$0xf]
  %v73 = vld [vmem:[%s0 + $0xdc] sm:$0xf]
  %v74 = vld [vmem:[%s0 + $0xe0] sm:$0xf]
  %v75 = vld [vmem:[%s0 + $0xe4] sm:$0xf]
  %v76 = vld [vmem:[%s0 + $0xe8] sm:$0xf]
  %v77 = vld [vmem:[%s0 + $0xec] sm:$0xf]
  %v78 = vld [vmem:[%s0 + $0xf0] sm:$0xf]
  %v79 = vld [vmem:[%s0 + $0xf4] sm:$0xf]
  %v80 = vld [vmem:[%s0 + $0xf8] sm:$0xf]
  %v81 = vld [vmem:[%s0 + $0xfc] sm:$0xf]
  %v82 = vld [vmem:[%s1] sm:$0xf]
  %v83 = vld [vmem:[%s1 + $0x4] sm:$0xf]
  %v84 = vld [vmem:[%s1 + $0x8] sm:$0xf]
  %v85 = vld [vmem:[%s1 + $0xc] sm:$0xf]
  %v86 = vld [vmem:[%s2] sm:$0x1]
  %v88 = vlaneseq
  %v89 = vshrl.u32 %v88, 7
  %v90 = vsub.s32 0, %v89
  %v91 = vrot.slane %v86, %v90
  %v157 = vunpack.c.l.b16 %v18
  %v158 = vunpack.c.l.b16 %v19
  %v159 = vunpack.c.l.b16 %v20
  %v160 = vunpack.c.l.b16 %v21
  %v161 = vunpack.c.l.b16 %v22
  %v162 = vunpack.c.l.b16 %v23
  %v163 = vunpack.c.l.b16 %v24
  %v164 = vunpack.c.l.b16 %v25
  %v165 = vunpack.c.l.b16 %v26
  %v166 = vunpack.c.l.b16 %v27
  %v167 = vunpack.c.l.b16 %v28
  %v168 = vunpack.c.l.b16 %v29
  %v169 = vunpack.c.l.b16 %v30
  %v170 = vunpack.c.l.b16 %v31
  %v171 = vunpack.c.l.b16 %v32
  %v172 = vunpack.c.l.b16 %v33
  %v173 = vunpack.c.l.b16 %v34
  %v174 = vunpack.c.l.b16 %v35
  %v175 = vunpack.c.l.b16 %v36
  %v176 = vunpack.c.l.b16 %v37
  %v177 = vunpack.c.l.b16 %v38
  %v178 = vunpack.c.l.b16 %v39
  %v179 = vunpack.c.l.b16 %v40
  %v180 = vunpack.c.l.b16 %v41
  %v181 = vunpack.c.l.b16 %v42
  %v182 = vunpack.c.l.b16 %v43
  %v183 = vunpack.c.l.b16 %v44
  %v184 = vunpack.c.l.b16 %v45
  %v185 = vunpack.c.l.b16 %v46
  %v186 = vunpack.c.l.b16 %v47
  %v187 = vunpack.c.l.b16 %v48
  %v188 = vunpack.c.l.b16 %v49
  %v189 = vunpack.c.l.b16 %v50
  %v190 = vunpack.c.l.b16 %v51
  %v191 = vunpack.c.l.b16 %v52
  %v192 = vunpack.c.l.b16 %v53
  %v193 = vunpack.c.l.b16 %v54
  %v194 = vunpack.c.l.b16 %v55
  %v195 = vunpack.c.l.b16 %v56
  %v196 = vunpack.c.l.b16 %v57
  %v197 = vunpack.c.l.b16 %v58
  %v198 = vunpack.c.l.b16 %v59
  %v199 = vunpack.c.l.b16 %v60
  %v200 = vunpack.c.l.b16 %v61
  %v201 = vunpack.c.l.b16 %v62
  %v202 = vunpack.c.l.b16 %v63
  %v203 = vunpack.c.l.b16 %v64
  %v204 = vunpack.c.l.b16 %v65
  %v205 = vunpack.c.l.b16 %v66
  %v206 = vunpack.c.l.b16 %v67
  %v207 = vunpack.c.l.b16 %v68
  %v208 = vunpack.c.l.b16 %v69
  %v209 = vunpack.c.l.b16 %v70
  %v210 = vunpack.c.l.b16 %v71
  %v211 = vunpack.c.l.b16 %v72
  %v212 = vunpack.c.l.b16 %v73
  %v213 = vunpack.c.l.b16 %v74
  %v214 = vunpack.c.l.b16 %v75
  %v215 = vunpack.c.l.b16 %v76
  %v216 = vunpack.c.l.b16 %v77
  %v217 = vunpack.c.l.b16 %v78
  %v218 = vunpack.c.l.b16 %v79
  %v219 = vunpack.c.l.b16 %v80
  %v220 = vunpack.c.l.b16 %v81
  %v221 = vpack.c.b16 %v158, %v157
  %v222 = vpack.c.b16 %v160, %v159
  %v223 = vpack.c.b16 %v162, %v161
  %v224 = vpack.c.b16 %v164, %v163
  %v225 = vpack.c.b16 %v166, %v165
  %v226 = vpack.c.b16 %v168, %v167
  %v227 = vpack.c.b16 %v170, %v169
  %v228 = vpack.c.b16 %v172, %v171
  %v229 = vpack.c.b16 %v174, %v173
  %v230 = vpack.c.b16 %v176, %v175
  %v231 = vpack.c.b16 %v178, %v177
  %v232 = vpack.c.b16 %v180, %v179
  %v233 = vpack.c.b16 %v182, %v181
  %v234 = vpack.c.b16 %v184, %v183
  %v235 = vpack.c.b16 %v186, %v185
  %v236 = vpack.c.b16 %v188, %v187
  %v237 = vpack.c.b16 %v190, %v189
  %v238 = vpack.c.b16 %v192, %v191
  %v239 = vpack.c.b16 %v194, %v193
  %v240 = vpack.c.b16 %v196, %v195
  %v241 = vpack.c.b16 %v198, %v197
  %v242 = vpack.c.b16 %v200, %v199
  %v243 = vpack.c.b16 %v202, %v201
  %v244 = vpack.c.b16 %v204, %v203
  %v245 = vpack.c.b16 %v206, %v205
  %v246 = vpack.c.b16 %v208, %v207
  %v247 = vpack.c.b16 %v210, %v209
  %v248 = vpack.c.b16 %v212, %v211
  %v249 = vpack.c.b16 %v214, %v213
  %v250 = vpack.c.b16 %v216, %v215
  %v251 = vpack.c.b16 %v218, %v217
  %v252 = vpack.c.b16 %v220, %v219
  %v257 = vunpack.c.l.b16 %v82
  %v258 = vunpack.c.l.b16 %v83
  %v259 = vunpack.c.l.b16 %v84
  %v260 = vunpack.c.l.b16 %v85
  %v261 = vpack.c.b16 %v258, %v257
  %v262 = vpack.c.b16 %v260, %v259
  %vm265 = vcmask 261120
  %v267 = vsel %vm265, %v221, 0
  %v270 = vsel %vm265, %v222, 0
  %v273 = vsel %vm265, %v223, 0
  %v276 = vsel %vm265, %v224, 0
  %v279 = vsel %vm265, %v225, 0
  %v282 = vsel %vm265, %v226, 0
  %v285 = vsel %vm265, %v227, 0
  %v288 = vsel %vm265, %v228, 0
  %v291 = vsel %vm265, %v229, 0
  %v294 = vsel %vm265, %v230, 0
  %v297 = vsel %vm265, %v231, 0
  %v300 = vsel %vm265, %v232, 0
  %v303 = vsel %vm265, %v233, 0
  %v306 = vsel %vm265, %v234, 0
  %v309 = vsel %vm265, %v235, 0
  %v312 = vsel %vm265, %v236, 0
  %v315 = vsel %vm265, %v237, 0
  %v318 = vsel %vm265, %v238, 0
  %v321 = vsel %vm265, %v239, 0
  %v324 = vsel %vm265, %v240, 0
  %v327 = vsel %vm265, %v241, 0
  %v330 = vsel %vm265, %v242, 0
  %v333 = vsel %vm265, %v243, 0
  %v336 = vsel %vm265, %v244, 0
  %v339 = vsel %vm265, %v245, 0
  %v342 = vsel %vm265, %v246, 0
  %v345 = vsel %vm265, %v247, 0
  %v348 = vsel %vm265, %v248, 0
  %v351 = vsel %vm265, %v249, 0
  %v354 = vsel %vm265, %v250, 0
  %v357 = vsel %vm265, %v251, 0
  %v360 = vsel %vm265, %v252, 0
  %362 = vmatprep.subr.bf16.mxu0 0
  %363 = vmatpush1.bf16.msra.mxu0 %v261
  %364 = vmatprep.subr.bf16.mxu0 0
  %365 = vmatpush1.bf16.msra.mxu0 %v262
  %366 = vmatprep.subr.bf16.mxu0 0
  %367 = vmatpush1.bf16.msra.mxu0 0
  %368 = vmatprep.subr.bf16.mxu0 0
  %369 = vmatpush1.bf16.msra.mxu0 0
  %370 = vmatprep.subr.bf16.mxu0 0
  %371 = vmatpush1.bf16.msra.mxu0 0
  %372 = vmatprep.subr.bf16.mxu0 0
  %373 = vmatpush1.bf16.msra.mxu0 0
  %374 = vmatprep.subr.bf16.mxu0 0
  %375 = vmatpush1.bf16.msra.mxu0 0
  %376 = vmatprep.subr.bf16.mxu0 0
  %377 = vmatpush1.bf16.msra.mxu0 0
  %378 = vmatprep.subr.bf16.mxu0 0
  %379 = vmatpush1.bf16.msra.mxu0 0
  %380 = vmatprep.subr.bf16.mxu0 0
  %381 = vmatpush1.bf16.msra.mxu0 0
  %382 = vmatprep.subr.bf16.mxu0 0
  %383 = vmatpush1.bf16.msra.mxu0 0
  %384 = vmatprep.subr.bf16.mxu0 0
  %385 = vmatpush1.bf16.msra.mxu0 0
  %386 = vmatprep.subr.bf16.mxu0 0
  %387 = vmatpush1.bf16.msra.mxu0 0
  %388 = vmatprep.subr.bf16.mxu0 0
  %389 = vmatpush1.bf16.msra.mxu0 0
  %390 = vmatprep.subr.bf16.mxu0 0
  %391 = vmatpush1.bf16.msra.mxu0 0
  %392 = vmatprep.subr.bf16.mxu0 0
  %393 = vmatpush1.bf16.msra.mxu0 0
  %394 = vmatprep.mubr.bf16.mxu0 0
  %395 = vmatmul.mubr.bf16.gmra.mrb[0].mxu0 %v267
  %v396 = vpop.f32.mrb[0].mxu0
  %v397 = vadd.f32 %v91, %v396
  %v398 = vpop.f32.mrb[0].mxu0
  %v399 = vpop.f32.mrb[0].mxu0
  %v400 = vadd.f32 %v91, %v399
  %v401 = vpop.f32.mrb[0].mxu0
  %402 = vmatprep.mubr.bf16.mxu0 0
  %403 = vmatmul.mubr.bf16.gmra.mrb[0].mxu0 %v270
  %v404 = vpop.f32.mrb[0].mxu0
  %v405 = vadd.f32 %v91, %v404
  %v406 = vpop.f32.mrb[0].mxu0
  %v407 = vpop.f32.mrb[0].mxu0
  %v408 = vadd.f32 %v91, %v407
  %v409 = vpop.f32.mrb[0].mxu0
  %410 = vmatprep.mubr.bf16.mxu0 0
  %411 = vmatmul.mubr.bf16.gmra.mrb[0].mxu0 %v273
  %v412 = vpop.f32.mrb[0].mxu0
  %v413 = vadd.f32 %v91, %v412
  %v414 = vpop.f32.mrb[0].mxu0
  %v415 = vpop.f32.mrb[0].mxu0
  %v416 = vadd.f32 %v91, %v415
  %v417 = vpop.f32.mrb[0].mxu0
  %418 = vmatprep.mubr.bf16.mxu0 0
  %419 = vmatmul.mubr.bf16.gmra.mrb[0].mxu0 %v276
  %v420 = vpop.f32.mrb[0].mxu0
  %v421 = vadd.f32 %v91, %v420
  %v422 = vpop.f32.mrb[0].mxu0
  %v423 = vpop.f32.mrb[0].mxu0
  %v424 = vadd.f32 %v91, %v423
  %v425 = vpop.f32.mrb[0].mxu0
  %426 = vmatprep.mubr.bf16.mxu0 0
  %427 = vmatmul.mubr.bf16.gmra.mrb[0].mxu0 %v279
  %v428 = vpop.f32.mrb[0].mxu0
  %v429 = vadd.f32 %v91, %v428
  %v430 = vpop.f32.mrb[0].mxu0
  %v431 = vpop.f32.mrb[0].mxu0
  %v432 = vadd.f32 %v91, %v431
  %v433 = vpop.f32.mrb[0].mxu0
  %434 = vmatprep.mubr.bf16.mxu0 0
  %435 = vmatmul.mubr.bf16.gmra.mrb[0].mxu0 %v282
  %v436 = vpop.f32.mrb[0].mxu0
  %v437 = vadd.f32 %v91, %v436
  %v438 = vpop.f32.mrb[0].mxu0
  %v439 = vpop.f32.mrb[0].mxu0
  %v440 = vadd.f32 %v91, %v439
  %v441 = vpop.f32.mrb[0].mxu0
  %442 = vmatprep.mubr.bf16.mxu0 0
  %443 = vmatmul.mubr.bf16.gmra.mrb[0].mxu0 %v285
  %v444 = vpop.f32.mrb[0].mxu0
  %v445 = vadd.f32 %v91, %v444
  %v446 = vpop.f32.mrb[0].mxu0
  %v447 = vpop.f32.mrb[0].mxu0
  %v448 = vadd.f32 %v91, %v447
  %v449 = vpop.f32.mrb[0].mxu0
  %450 = vmatprep.mubr.bf16.mxu0 0
  %451 = vmatmul.mubr.bf16.gmra.mrb[0].mxu0 %v288
  %v452 = vpop.f32.mrb[0].mxu0
  %v453 = vadd.f32 %v91, %v452
  %v454 = vpop.f32.mrb[0].mxu0
  %v455 = vpop.f32.mrb[0].mxu0
  %v456 = vadd.f32 %v91, %v455
  %v457 = vpop.f32.mrb[0].mxu0
  %458 = vmatprep.mubr.bf16.mxu0 0
  %459 = vmatmul.mubr.bf16.gmra.mrb[0].mxu0 %v291
  %v460 = vpop.f32.mrb[0].mxu0
  %v461 = vadd.f32 %v91, %v460
  %v462 = vpop.f32.mrb[0].mxu0
  %v463 = vpop.f32.mrb[0].mxu0
  %v464 = vadd.f32 %v91, %v463
  %v465 = vpop.f32.mrb[0].mxu0
  %466 = vmatprep.mubr.bf16.mxu0 0
  %467 = vmatmul.mubr.bf16.gmra.mrb[0].mxu0 %v294
  %v468 = vpop.f32.mrb[0].mxu0
  %v469 = vadd.f32 %v91, %v468
  %v470 = vpop.f32.mrb[0].mxu0
  %v471 = vpop.f32.mrb[0].mxu0
  %v472 = vadd.f32 %v91, %v471
  %v473 = vpop.f32.mrb[0].mxu0
  %474 = vmatprep.mubr.bf16.mxu0 0
  %475 = vmatmul.mubr.bf16.gmra.mrb[0].mxu0 %v297
  %v476 = vpop.f32.mrb[0].mxu0
  %v477 = vadd.f32 %v91, %v476
  %v478 = vpop.f32.mrb[0].mxu0
  %v479 = vpop.f32.mrb[0].mxu0
  %v480 = vadd.f32 %v91, %v479
  %v481 = vpop.f32.mrb[0].mxu0
  %482 = vmatprep.mubr.bf16.mxu0 0
  %483 = vmatmul.mubr.bf16.gmra.mrb[0].mxu0 %v300
  %v484 = vpop.f32.mrb[0].mxu0
  %v485 = vadd.f32 %v91, %v484
  %v486 = vpop.f32.mrb[0].mxu0
  %v487 = vpop.f32.mrb[0].mxu0
  %v488 = vadd.f32 %v91, %v487
  %v489 = vpop.f32.mrb[0].mxu0
  %490 = vmatprep.mubr.bf16.mxu0 0
  %491 = vmatmul.mubr.bf16.gmra.mrb[0].mxu0 %v303
  %v492 = vpop.f32.mrb[0].mxu0
  %v493 = vadd.f32 %v91, %v492
  %v494 = vpop.f32.mrb[0].mxu0
  %v495 = vpop.f32.mrb[0].mxu0
  %v496 = vadd.f32 %v91, %v495
  %v497 = vpop.f32.mrb[0].mxu0
  %498 = vmatprep.mubr.bf16.mxu0 0
  %499 = vmatmul.mubr.bf16.gmra.mrb[0].mxu0 %v306
  %v500 = vpop.f32.mrb[0].mxu0
  %v501 = vadd.f32 %v91, %v500
  %v502 = vpop.f32.mrb[0].mxu0
  %v503 = vpop.f32.mrb[0].mxu0
  %v504 = vadd.f32 %v91, %v503
  %v505 = vpop.f32.mrb[0].mxu0
  %506 = vmatprep.mubr.bf16.mxu0 0
  %507 = vmatmul.mubr.bf16.gmra.mrb[0].mxu0 %v309
  %v508 = vpop.f32.mrb[0].mxu0
  %v509 = vadd.f32 %v91, %v508
  %v510 = vpop.f32.mrb[0].mxu0
  %v511 = vpop.f32.mrb[0].mxu0
  %v512 = vadd.f32 %v91, %v511
  %v513 = vpop.f32.mrb[0].mxu0
  %514 = vmatprep.mubr.bf16.mxu0 0
  %515 = vmatmul.mubr.bf16.gmra.mrb[0].mxu0 %v312
  %v516 = vpop.f32.mrb[0].mxu0
  %v517 = vadd.f32 %v91, %v516
  %v518 = vpop.f32.mrb[0].mxu0
  %v519 = vpop.f32.mrb[0].mxu0
  %v520 = vadd.f32 %v91, %v519
  %v521 = vpop.f32.mrb[0].mxu0
  %522 = vmatprep.mubr.bf16.mxu0 0
  %523 = vmatmul.mubr.bf16.gmra.mrb[0].mxu0 %v315
  %v524 = vpop.f32.mrb[0].mxu0
  %v525 = vadd.f32 %v91, %v524
  %v526 = vpop.f32.mrb[0].mxu0
  %v527 = vpop.f32.mrb[0].mxu0
  %v528 = vadd.f32 %v91, %v527
  %v529 = vpop.f32.mrb[0].mxu0
  %530 = vmatprep.mubr.bf16.mxu0 0
  %531 = vmatmul.mubr.bf16.gmra.mrb[0].mxu0 %v318
  %v532 = vpop.f32.mrb[0].mxu0
  %v533 = vadd.f32 %v91, %v532
  %v534 = vpop.f32.mrb[0].mxu0
  %v535 = vpop.f32.mrb[0].mxu0
  %v536 = vadd.f32 %v91, %v535
  %v537 = vpop.f32.mrb[0].mxu0
  %538 = vmatprep.mubr.bf16.mxu0 0
  %539 = vmatmul.mubr.bf16.gmra.mrb[0].mxu0 %v321
  %v540 = vpop.f32.mrb[0].mxu0
  %v541 = vadd.f32 %v91, %v540
  %v542 = vpop.f32.mrb[0].mxu0
  %v543 = vpop.f32.mrb[0].mxu0
  %v544 = vadd.f32 %v91, %v543
  %v545 = vpop.f32.mrb[0].mxu0
  %546 = vmatprep.mubr.bf16.mxu0 0
  %547 = vmatmul.mubr.bf16.gmra.mrb[0].mxu0 %v324
  %v548 = vpop.f32.mrb[0].mxu0
  %v549 = vadd.f32 %v91, %v548
  %v550 = vpop.f32.mrb[0].mxu0
  %v551 = vpop.f32.mrb[0].mxu0
  %v552 = vadd.f32 %v91, %v551
  %v553 = vpop.f32.mrb[0].mxu0
  %554 = vmatprep.mubr.bf16.mxu0 0
  %555 = vmatmul.mubr.bf16.gmra.mrb[0].mxu0 %v327
  %v556 = vpop.f32.mrb[0].mxu0
  %v557 = vadd.f32 %v91, %v556
  %v558 = vpop.f32.mrb[0].mxu0
  %v559 = vpop.f32.mrb[0].mxu0
  %v560 = vadd.f32 %v91, %v559
  %v561 = vpop.f32.mrb[0].mxu0
  %562 = vmatprep.mubr.bf16.mxu0 0
  %563 = vmatmul.mubr.bf16.gmra.mrb[0].mxu0 %v330
  %v564 = vpop.f32.mrb[0].mxu0
  %v565 = vadd.f32 %v91, %v564
  %v566 = vpop.f32.mrb[0].mxu0
  %v567 = vpop.f32.mrb[0].mxu0
  %v568 = vadd.f32 %v91, %v567
  %v569 = vpop.f32.mrb[0].mxu0
  %570 = vmatprep.mubr.bf16.mxu0 0
  %571 = vmatmul.mubr.bf16.gmra.mrb[0].mxu0 %v333
  %v572 = vpop.f32.mrb[0].mxu0
  %v573 = vadd.f32 %v91, %v572
  %v574 = vpop.f32.mrb[0].mxu0
  %v575 = vpop.f32.mrb[0].mxu0
  %v576 = vadd.f32 %v91, %v575
  %v577 = vpop.f32.mrb[0].mxu0
  %578 = vmatprep.mubr.bf16.mxu0 0
  %579 = vmatmul.mubr.bf16.gmra.mrb[0].mxu0 %v336
  %v580 = vpop.f32.mrb[0].mxu0
  %v581 = vadd.f32 %v91, %v580
  %v582 = vpop.f32.mrb[0].mxu0
  %v583 = vpop.f32.mrb[0].mxu0
  %v584 = vadd.f32 %v91, %v583
  %v585 = vpop.f32.mrb[0].mxu0
  %586 = vmatprep.mubr.bf16.mxu0 0
  %587 = vmatmul.mubr.bf16.gmra.mrb[0].mxu0 %v339
  %v588 = vpop.f32.mrb[0].mxu0
  %v589 = vadd.f32 %v91, %v588
  %v590 = vpop.f32.mrb[0].mxu0
  %v591 = vpop.f32.mrb[0].mxu0
  %v592 = vadd.f32 %v91, %v591
  %v593 = vpop.f32.mrb[0].mxu0
  %594 = vmatprep.mubr.bf16.mxu0 0
  %595 = vmatmul.mubr.bf16.gmra.mrb[0].mxu0 %v342
  %v596 = vpop.f32.mrb[0].mxu0
  %v597 = vadd.f32 %v91, %v596
  %v598 = vpop.f32.mrb[0].mxu0
  %v599 = vpop.f32.mrb[0].mxu0
  %v600 = vadd.f32 %v91, %v599
  %v601 = vpop.f32.mrb[0].mxu0
  %602 = vmatprep.mubr.bf16.mxu0 0
  %603 = vmatmul.mubr.bf16.gmra.mrb[0].mxu0 %v345
  %v604 = vpop.f32.mrb[0].mxu0
  %v605 = vadd.f32 %v91, %v604
  %v606 = vpop.f32.mrb[0].mxu0
  %v607 = vpop.f32.mrb[0].mxu0
  %v608 = vadd.f32 %v91, %v607
  %v609 = vpop.f32.mrb[0].mxu0
  %610 = vmatprep.mubr.bf16.mxu0 0
  %611 = vmatmul.mubr.bf16.gmra.mrb[0].mxu0 %v348
  %v612 = vpop.f32.mrb[0].mxu0
  %v613 = vadd.f32 %v91, %v612
  %v614 = vpop.f32.mrb[0].mxu0
  %v615 = vpop.f32.mrb[0].mxu0
  %v616 = vadd.f32 %v91, %v615
  %v617 = vpop.f32.mrb[0].mxu0
  %618 = vmatprep.mubr.bf16.mxu0 0
  %619 = vmatmul.mubr.bf16.gmra.mrb[0].mxu0 %v351
  %v620 = vpop.f32.mrb[0].mxu0
  %v621 = vadd.f32 %v91, %v620
  %v622 = vpop.f32.mrb[0].mxu0
  %v623 = vpop.f32.mrb[0].mxu0
  %v624 = vadd.f32 %v91, %v623
  %v625 = vpop.f32.mrb[0].mxu0
  %626 = vmatprep.mubr.bf16.mxu0 0
  %627 = vmatmul.mubr.bf16.gmra.mrb[0].mxu0 %v354
  %v628 = vpop.f32.mrb[0].mxu0
  %v629 = vadd.f32 %v91, %v628
  %v630 = vpop.f32.mrb[0].mxu0
  %v631 = vpop.f32.mrb[0].mxu0
  %v632 = vadd.f32 %v91, %v631
  %v633 = vpop.f32.mrb[0].mxu0
  %634 = vmatprep.mubr.bf16.mxu0 0
  %635 = vmatmul.mubr.bf16.gmra.mrb[0].mxu0 %v357
  %v636 = vpop.f32.mrb[0].mxu0
  %v637 = vadd.f32 %v91, %v636
  %v638 = vpop.f32.mrb[0].mxu0
  %v639 = vpop.f32.mrb[0].mxu0
  %v640 = vadd.f32 %v91, %v639
  %v641 = vpop.f32.mrb[0].mxu0
  %642 = vmatprep.mubr.bf16.mxu0 0
  %643 = vmatmul.mubr.bf16.gmra.mrb[0].mxu0 %v360
  %v644 = vpop.f32.mrb[0].mxu0
  %v645 = vadd.f32 %v91, %v644
  %v646 = vpop.f32.mrb[0].mxu0
  %v647 = vpop.f32.mrb[0].mxu0
  %v648 = vadd.f32 %v91, %v647
  %v649 = vpop.f32.mrb[0].mxu0
  %650 = vdwg.mxu0
  %v651 = vpack.c.bf16 %v400, %v397
  %v652 = vpack.c.bf16 %v408, %v405
  %v653 = vpack.c.bf16 %v416, %v413
  %v654 = vpack.c.bf16 %v424, %v421
  %v655 = vpack.c.bf16 %v432, %v429
  %v656 = vpack.c.bf16 %v440, %v437
  %v657 = vpack.c.bf16 %v448, %v445
  %v658 = vpack.c.bf16 %v456, %v453
  %v659 = vpack.c.bf16 %v464, %v461
  %v660 = vpack.c.bf16 %v472, %v469
  %v661 = vpack.c.bf16 %v480, %v477
  %v662 = vpack.c.bf16 %v488, %v485
  %v663 = vpack.c.bf16 %v496, %v493
  %v664 = vpack.c.bf16 %v504, %v501
  %v665 = vpack.c.bf16 %v512, %v509
  %v666 = vpack.c.bf16 %v520, %v517
  %v667 = vpack.c.bf16 %v528, %v525
  %v668 = vpack.c.bf16 %v536, %v533
  %v669 = vpack.c.bf16 %v544, %v541
  %v670 = vpack.c.bf16 %v552, %v549
  %v671 = vpack.c.bf16 %v560, %v557
  %v672 = vpack.c.bf16 %v568, %v565
  %v673 = vpack.c.bf16 %v576, %v573
  %v674 = vpack.c.bf16 %v584, %v581
  %v675 = vpack.c.bf16 %v592, %v589
  %v676 = vpack.c.bf16 %v600, %v597
  %v677 = vpack.c.bf16 %v608, %v605
  %v678 = vpack.c.bf16 %v616, %v613
  %v679 = vpack.c.bf16 %v624, %v621
  %v680 = vpack.c.bf16 %v632, %v629
  %v681 = vpack.c.bf16 %v640, %v637
  %v682 = vpack.c.bf16 %v648, %v645
  %v715 = vunpack.c.l.b16 %v651
  %v716 = vunpack.c.h.b16 %v651
  %v717 = vunpack.c.l.b16 %v652
  %v718 = vunpack.c.h.b16 %v652
  %v719 = vunpack.c.l.b16 %v653
  %v720 = vunpack.c.h.b16 %v653
  %v721 = vunpack.c.l.b16 %v654
  %v722 = vunpack.c.h.b16 %v654
  %v723 = vunpack.c.l.b16 %v655
  %v724 = vunpack.c.h.b16 %v655
  %v725 = vunpack.c.l.b16 %v656
  %v726 = vunpack.c.h.b16 %v656
  %v727 = vunpack.c.l.b16 %v657
  %v728 = vunpack.c.h.b16 %v657
  %v729 = vunpack.c.l.b16 %v658
  %v730 = vunpack.c.h.b16 %v658
  %v731 = vunpack.c.l.b16 %v659
  %v732 = vunpack.c.h.b16 %v659
  %v733 = vunpack.c.l.b16 %v660
  %v734 = vunpack.c.h.b16 %v660
  %v735 = vunpack.c.l.b16 %v661
  %v736 = vunpack.c.h.b16 %v661
  %v737 = vunpack.c.l.b16 %v662
  %v738 = vunpack.c.h.b16 %v662
  %v739 = vunpack.c.l.b16 %v663
  %v740 = vunpack.c.h.b16 %v663
  %v741 = vunpack.c.l.b16 %v664
  %v742 = vunpack.c.h.b16 %v664
  %v743 = vunpack.c.l.b16 %v665
  %v744 = vunpack.c.h.b16 %v665
  %v745 = vunpack.c.l.b16 %v666
  %v746 = vunpack.c.h.b16 %v666
  %v747 = vunpack.c.l.b16 %v667
  %v748 = vunpack.c.h.b16 %v667
  %v749 = vunpack.c.l.b16 %v668
  %v750 = vunpack.c.h.b16 %v668
  %v751 = vunpack.c.l.b16 %v669
  %v752 = vunpack.c.h.b16 %v669
  %v753 = vunpack.c.l.b16 %v670
  %v754 = vunpack.c.h.b16 %v670
  %v755 = vunpack.c.l.b16 %v671
  %v756 = vunpack.c.h.b16 %v671
  %v757 = vunpack.c.l.b16 %v672
  %v758 = vunpack.c.h.b16 %v672
  %v759 = vunpack.c.l.b16 %v673
  %v760 = vunpack.c.h.b16 %v673
  %v761 = vunpack.c.l.b16 %v674
  %v762 = vunpack.c.h.b16 %v674
  %v763 = vunpack.c.l.b16 %v675
  %v764 = vunpack.c.h.b16 %v675
  %v765 = vunpack.c.l.b16 %v676
  %v766 = vunpack.c.h.b16 %v676
  %v767 = vunpack.c.l.b16 %v677
  %v768 = vunpack.c.h.b16 %v677
  %v769 = vunpack.c.l.b16 %v678
  %v770 = vunpack.c.h.b16 %v678
  %v771 = vunpack.c.l.b16 %v679
  %v772 = vunpack.c.h.b16 %v679
  %v773 = vunpack.c.l.b16 %v680
  %v774 = vunpack.c.h.b16 %v680
  %v775 = vunpack.c.l.b16 %v681
  %v776 = vunpack.c.h.b16 %v681
  %v777 = vunpack.c.l.b16 %v682
  %v778 = vunpack.c.h.b16 %v682
  %v779 = vpack.c.b16 %v715, %v715
  %v780 = vpack.c.b16 %v716, %v716
  %v781 = vpack.c.b16 %v717, %v717
  %v782 = vpack.c.b16 %v718, %v718
  %v783 = vpack.c.b16 %v719, %v719
  %v784 = vpack.c.b16 %v720, %v720
  %v785 = vpack.c.b16 %v721, %v721
  %v786 = vpack.c.b16 %v722, %v722
  %v787 = vpack.c.b16 %v723, %v723
  %v788 = vpack.c.b16 %v724, %v724
  %v789 = vpack.c.b16 %v725, %v725
  %v790 = vpack.c.b16 %v726, %v726
  %v791 = vpack.c.b16 %v727, %v727
  %v792 = vpack.c.b16 %v728, %v728
  %v793 = vpack.c.b16 %v729, %v729
  %v794 = vpack.c.b16 %v730, %v730
  %v795 = vpack.c.b16 %v731, %v731
  %v796 = vpack.c.b16 %v732, %v732
  %v797 = vpack.c.b16 %v733, %v733
  %v798 = vpack.c.b16 %v734, %v734
  %v799 = vpack.c.b16 %v735, %v735
  %v800 = vpack.c.b16 %v736, %v736
  %v801 = vpack.c.b16 %v737, %v737
  %v802 = vpack.c.b16 %v738, %v738
  %v803 = vpack.c.b16 %v739, %v739
  %v804 = vpack.c.b16 %v740, %v740
  %v805 = vpack.c.b16 %v741, %v741
  %v806 = vpack.c.b16 %v742, %v742
  %v807 = vpack.c.b16 %v743, %v743
  %v808 = vpack.c.b16 %v744, %v744
  %v809 = vpack.c.b16 %v745, %v745
  %v810 = vpack.c.b16 %v746, %v746
  %v811 = vpack.c.b16 %v747, %v747
  %v812 = vpack.c.b16 %v748, %v748
  %v813 = vpack.c.b16 %v749, %v749
  %v814 = vpack.c.b16 %v750, %v750
  %v815 = vpack.c.b16 %v751, %v751
  %v816 = vpack.c.b16 %v752, %v752
  %v817 = vpack.c.b16 %v753, %v753
  %v818 = vpack.c.b16 %v754, %v754
  %v819 = vpack.c.b16 %v755, %v755
  %v820 = vpack.c.b16 %v756, %v756
  %v821 = vpack.c.b16 %v757, %v757
  %v822 = vpack.c.b16 %v758, %v758
  %v823 = vpack.c.b16 %v759, %v759
  %v824 = vpack.c.b16 %v760, %v760
  %v825 = vpack.c.b16 %v761, %v761
  %v826 = vpack.c.b16 %v762, %v762
  %v827 = vpack.c.b16 %v763, %v763
  %v828 = vpack.c.b16 %v764, %v764
  %v829 = vpack.c.b16 %v765, %v765
  %v830 = vpack.c.b16 %v766, %v766
  %v831 = vpack.c.b16 %v767, %v767
  %v832 = vpack.c.b16 %v768, %v768
  %v833 = vpack.c.b16 %v769, %v769
  %v834 = vpack.c.b16 %v770, %v770
  %v835 = vpack.c.b16 %v771, %v771
  %v836 = vpack.c.b16 %v772, %v772
  %v837 = vpack.c.b16 %v773, %v773
  %v838 = vpack.c.b16 %v774, %v774
  %v839 = vpack.c.b16 %v775, %v775
  %v840 = vpack.c.b16 %v776, %v776
  %v841 = vpack.c.b16 %v777, %v777
  %v842 = vpack.c.b16 %v778, %v778
  %vm907 = vcmask 257024
  %908 = vst.msk [vmem:[%s3] sm:$0xf] %vm907, %v779
  %909 = vst.msk [vmem:[%s3 + $0x4] sm:$0xf] %vm907, %v780
  %910 = vst.msk [vmem:[%s3 + $0x8] sm:$0xf] %vm907, %v781
  %911 = vst.msk [vmem:[%s3 + $0xc] sm:$0xf] %vm907, %v782
  %912 = vst.msk [vmem:[%s3 + $0x10] sm:$0xf] %vm907, %v783
  %913 = vst.msk [vmem:[%s3 + $0x14] sm:$0xf] %vm907, %v784
  %914 = vst.msk [vmem:[%s3 + $0x18] sm:$0xf] %vm907, %v785
  %915 = vst.msk [vmem:[%s3 + $0x1c] sm:$0xf] %vm907, %v786
  %916 = vst.msk [vmem:[%s3 + $0x20] sm:$0xf] %vm907, %v787
  %917 = vst.msk [vmem:[%s3 + $0x24] sm:$0xf] %vm907, %v788
  %918 = vst.msk [vmem:[%s3 + $0x28] sm:$0xf] %vm907, %v789
  %919 = vst.msk [vmem:[%s3 + $0x2c] sm:$0xf] %vm907, %v790
  %920 = vst.msk [vmem:[%s3 + $0x30] sm:$0xf] %vm907, %v791
  %921 = vst.msk [vmem:[%s3 + $0x34] sm:$0xf] %vm907, %v792
  %922 = vst.msk [vmem:[%s3 + $0x38] sm:$0xf] %vm907, %v793
  %923 = vst.msk [vmem:[%s3 + $0x3c] sm:$0xf] %vm907, %v794
  %924 = vst.msk [vmem:[%s3 + $0x40] sm:$0xf] %vm907, %v795
  %925 = vst.msk [vmem:[%s3 + $0x44] sm:$0xf] %vm907, %v796
  %926 = vst.msk [vmem:[%s3 + $0x48] sm:$0xf] %vm907, %v797
  %927 = vst.msk [vmem:[%s3 + $0x4c] sm:$0xf] %vm907, %v798
  %928 = vst.msk [vmem:[%s3 + $0x50] sm:$0xf] %vm907, %v799
  %929 = vst.msk [vmem:[%s3 + $0x54] sm:$0xf] %vm907, %v800
  %930 = vst.msk [vmem:[%s3 + $0x58] sm:$0xf] %vm907, %v801
  %931 = vst.msk [vmem:[%s3 + $0x5c] sm:$0xf] %vm907, %v802
  %932 = vst.msk [vmem:[%s3 + $0x60] sm:$0xf] %vm907, %v803
  %933 = vst.msk [vmem:[%s3 + $0x64] sm:$0xf] %vm907, %v804
  %934 = vst.msk [vmem:[%s3 + $0x68] sm:$0xf] %vm907, %v805
  %935 = vst.msk [vmem:[%s3 + $0x6c] sm:$0xf] %vm907, %v806
  %936 = vst.msk [vmem:[%s3 + $0x70] sm:$0xf] %vm907, %v807
  %937 = vst.msk [vmem:[%s3 + $0x74] sm:$0xf] %vm907, %v808
  %938 = vst.msk [vmem:[%s3 + $0x78] sm:$0xf] %vm907, %v809
  %939 = vst.msk [vmem:[%s3 + $0x7c] sm:$0xf] %vm907, %v810
  %940 = vst.msk [vmem:[%s3 + $0x80] sm:$0xf] %vm907, %v811
  %941 = vst.msk [vmem:[%s3 + $0x84] sm:$0xf] %vm907, %v812
  %942 = vst.msk [vmem:[%s3 + $0x88] sm:$0xf] %vm907, %v813
  %943 = vst.msk [vmem:[%s3 + $0x8c] sm:$0xf] %vm907, %v814
  %944 = vst.msk [vmem:[%s3 + $0x90] sm:$0xf] %vm907, %v815
  %945 = vst.msk [vmem:[%s3 + $0x94] sm:$0xf] %vm907, %v816
  %946 = vst.msk [vmem:[%s3 + $0x98] sm:$0xf] %vm907, %v817
  %947 = vst.msk [vmem:[%s3 + $0x9c] sm:$0xf] %vm907, %v818
  %948 = vst.msk [vmem:[%s3 + $0xa0] sm:$0xf] %vm907, %v819
  %949 = vst.msk [vmem:[%s3 + $0xa4] sm:$0xf] %vm907, %v820
  %950 = vst.msk [vmem:[%s3 + $0xa8] sm:$0xf] %vm907, %v821
  %951 = vst.msk [vmem:[%s3 + $0xac] sm:$0xf] %vm907, %v822
  %952 = vst.msk [vmem:[%s3 + $0xb0] sm:$0xf] %vm907, %v823
  %953 = vst.msk [vmem:[%s3 + $0xb4] sm:$0xf] %vm907, %v824
  %954 = vst.msk [vmem:[%s3 + $0xb8] sm:$0xf] %vm907, %v825
  %955 = vst.msk [vmem:[%s3 + $0xbc] sm:$0xf] %vm907, %v826
  %956 = vst.msk [vmem:[%s3 + $0xc0] sm:$0xf] %vm907, %v827
  %957 = vst.msk [vmem:[%s3 + $0xc4] sm:$0xf] %vm907, %v828
  %958 = vst.msk [vmem:[%s3 + $0xc8] sm:$0xf] %vm907, %v829
  %959 = vst.msk [vmem:[%s3 + $0xcc] sm:$0xf] %vm907, %v830
  %960 = vst.msk [vmem:[%s3 + $0xd0] sm:$0xf] %vm907, %v831
  %961 = vst.msk [vmem:[%s3 + $0xd4] sm:$0xf] %vm907, %v832
  %962 = vst.msk [vmem:[%s3 + $0xd8] sm:$0xf] %vm907, %v833
  %963 = vst.msk [vmem:[%s3 + $0xdc] sm:$0xf] %vm907, %v834
  %964 = vst.msk [vmem:[%s3 + $0xe0] sm:$0xf] %vm907, %v835
  %965 = vst.msk [vmem:[%s3 + $0xe4] sm:$0xf] %vm907, %v836
  %966 = vst.msk [vmem:[%s3 + $0xe8] sm:$0xf] %vm907, %v837
  %967 = vst.msk [vmem:[%s3 + $0xec] sm:$0xf] %vm907, %v838
  %968 = vst.msk [vmem:[%s3 + $0xf0] sm:$0xf] %vm907, %v839
  %969 = vst.msk [vmem:[%s3 + $0xf4] sm:$0xf] %vm907, %v840
  %970 = vst.msk [vmem:[%s3 + $0xf8] sm:$0xf] %vm907, %v841
  %971 = vst.msk [vmem:[%s3 + $0xfc] sm:$0xf] %vm907, %v842
  %972 = vrot.lane.b32.xlu0 %v779, 96
  %v973 = vpop.permute.xlu0 %972
  %974 = vrot.lane.b32.xlu0 %v780, 96
  %v975 = vpop.permute.xlu0 %974
  %976 = vrot.lane.b32.xlu0 %v781, 96
  %v977 = vpop.permute.xlu0 %976
  %978 = vrot.lane.b32.xlu0 %v782, 96
  %v979 = vpop.permute.xlu0 %978
  %980 = vrot.lane.b32.xlu0 %v783, 96
  %v981 = vpop.permute.xlu0 %980
  %982 = vrot.lane.b32.xlu0 %v784, 96
  %v983 = vpop.permute.xlu0 %982
  %984 = vrot.lane.b32.xlu0 %v785, 96
  %v985 = vpop.permute.xlu0 %984
  %986 = vrot.lane.b32.xlu0 %v786, 96
  %v987 = vpop.permute.xlu0 %986
  %988 = vrot.lane.b32.xlu0 %v787, 96
  %v989 = vpop.permute.xlu0 %988
  %990 = vrot.lane.b32.xlu0 %v788, 96
  %v991 = vpop.permute.xlu0 %990
  %992 = vrot.lane.b32.xlu0 %v789, 96
  %v993 = vpop.permute.xlu0 %992
  %994 = vrot.lane.b32.xlu0 %v790, 96
  %v995 = vpop.permute.xlu0 %994
  %996 = vrot.lane.b32.xlu0 %v791, 96
  %v997 = vpop.permute.xlu0 %996
  %998 = vrot.lane.b32.xlu0 %v792, 96
  %v999 = vpop.permute.xlu0 %998
  %1000 = vrot.lane.b32.xlu0 %v793, 96
  %v1001 = vpop.permute.xlu0 %1000
  %1002 = vrot.lane.b32.xlu0 %v794, 96
  %v1003 = vpop.permute.xlu0 %1002
  %1004 = vrot.lane.b32.xlu0 %v795, 96
  %v1005 = vpop.permute.xlu0 %1004
  %1006 = vrot.lane.b32.xlu0 %v796, 96
  %v1007 = vpop.permute.xlu0 %1006
  %1008 = vrot.lane.b32.xlu0 %v797, 96
  %v1009 = vpop.permute.xlu0 %1008
  %1010 = vrot.lane.b32.xlu0 %v798, 96
  %v1011 = vpop.permute.xlu0 %1010
  %1012 = vrot.lane.b32.xlu0 %v799, 96
  %v1013 = vpop.permute.xlu0 %1012
  %1014 = vrot.lane.b32.xlu0 %v800, 96
  %v1015 = vpop.permute.xlu0 %1014
  %1016 = vrot.lane.b32.xlu0 %v801, 96
  %v1017 = vpop.permute.xlu0 %1016
  %1018 = vrot.lane.b32.xlu0 %v802, 96
  %v1019 = vpop.permute.xlu0 %1018
  %1020 = vrot.lane.b32.xlu0 %v803, 96
  %v1021 = vpop.permute.xlu0 %1020
  %1022 = vrot.lane.b32.xlu0 %v804, 96
  %v1023 = vpop.permute.xlu0 %1022
  %1024 = vrot.lane.b32.xlu0 %v805, 96
  %v1025 = vpop.permute.xlu0 %1024
  %1026 = vrot.lane.b32.xlu0 %v806, 96
  %v1027 = vpop.permute.xlu0 %1026
  %1028 = vrot.lane.b32.xlu0 %v807, 96
  %v1029 = vpop.permute.xlu0 %1028
  %1030 = vrot.lane.b32.xlu0 %v808, 96
  %v1031 = vpop.permute.xlu0 %1030
  %1032 = vrot.lane.b32.xlu0 %v809, 96
  %v1033 = vpop.permute.xlu0 %1032
  %1034 = vrot.lane.b32.xlu0 %v810, 96
  %v1035 = vpop.permute.xlu0 %1034
  %1036 = vrot.lane.b32.xlu0 %v811, 96
  %v1037 = vpop.permute.xlu0 %1036
  %1038 = vrot.lane.b32.xlu0 %v812, 96
  %v1039 = vpop.permute.xlu0 %1038
  %1040 = vrot.lane.b32.xlu0 %v813, 96
  %v1041 = vpop.permute.xlu0 %1040
  %1042 = vrot.lane.b32.xlu0 %v814, 96
  %v1043 = vpop.permute.xlu0 %1042
  %1044 = vrot.lane.b32.xlu0 %v815, 96
  %v1045 = vpop.permute.xlu0 %1044
  %1046 = vrot.lane.b32.xlu0 %v816, 96
  %v1047 = vpop.permute.xlu0 %1046
  %1048 = vrot.lane.b32.xlu0 %v817, 96
  %v1049 = vpop.permute.xlu0 %1048
  %1050 = vrot.lane.b32.xlu0 %v818, 96
  %v1051 = vpop.permute.xlu0 %1050
  %1052 = vrot.lane.b32.xlu0 %v819, 96
  %v1053 = vpop.permute.xlu0 %1052
  %1054 = vrot.lane.b32.xlu0 %v820, 96
  %v1055 = vpop.permute.xlu0 %1054
  %1056 = vrot.lane.b32.xlu0 %v821, 96
  %v1057 = vpop.permute.xlu0 %1056
  %1058 = vrot.lane.b32.xlu0 %v822, 96
  %v1059 = vpop.permute.xlu0 %1058
  %1060 = vrot.lane.b32.xlu0 %v823, 96
  %v1061 = vpop.permute.xlu0 %1060
  %1062 = vrot.lane.b32.xlu0 %v824, 96
  %v1063 = vpop.permute.xlu0 %1062
  %1064 = vrot.lane.b32.xlu0 %v825, 96
  %v1065 = vpop.permute.xlu0 %1064
  %1066 = vrot.lane.b32.xlu0 %v826, 96
  %v1067 = vpop.permute.xlu0 %1066
  %1068 = vrot.lane.b32.xlu0 %v827, 96
  %v1069 = vpop.permute.xlu0 %1068
  %1070 = vrot.lane.b32.xlu0 %v828, 96
  %v1071 = vpop.permute.xlu0 %1070
  %1072 = vrot.lane.b32.xlu0 %v829, 96
  %v1073 = vpop.permute.xlu0 %1072
  %1074 = vrot.lane.b32.xlu0 %v830, 96
  %v1075 = vpop.permute.xlu0 %1074
  %1076 = vrot.lane.b32.xlu0 %v831, 96
  %v1077 = vpop.permute.xlu0 %1076
  %1078 = vrot.lane.b32.xlu0 %v832, 96
  %v1079 = vpop.permute.xlu0 %1078
  %1080 = vrot.lane.b32.xlu0 %v833, 96
  %v1081 = vpop.permute.xlu0 %1080
  %1082 = vrot.lane.b32.xlu0 %v834, 96
  %v1083 = vpop.permute.xlu0 %1082
  %1084 = vrot.lane.b32.xlu0 %v835, 96
  %v1085 = vpop.permute.xlu0 %1084
  %1086 = vrot.lane.b32.xlu0 %v836, 96
  %v1087 = vpop.permute.xlu0 %1086
  %1088 = vrot.lane.b32.xlu0 %v837, 96
  %v1089 = vpop.permute.xlu0 %1088
  %1090 = vrot.lane.b32.xlu0 %v838, 96
  %v1091 = vpop.permute.xlu0 %1090
  %1092 = vrot.lane.b32.xlu0 %v839, 96
  %v1093 = vpop.permute.xlu0 %1092
  %1094 = vrot.lane.b32.xlu0 %v840, 96
  %v1095 = vpop.permute.xlu0 %1094
  %1096 = vrot.lane.b32.xlu0 %v841, 96
  %v1097 = vpop.permute.xlu0 %1096
  %1098 = vrot.lane.b32.xlu0 %v842, 96
  %v1099 = vpop.permute.xlu0 %1098
  %1164 = vst.msk [vmem:[%s4] sm:$0xf] %vm907, %v973
  %1165 = vst.msk [vmem:[%s4 + $0x4] sm:$0xf] %vm907, %v975
  %1166 = vst.msk [vmem:[%s4 + $0x8] sm:$0xf] %vm907, %v977
  %1167 = vst.msk [vmem:[%s4 + $0xc] sm:$0xf] %vm907, %v979
  %1168 = vst.msk [vmem:[%s4 + $0x10] sm:$0xf] %vm907, %v981
  %1169 = vst.msk [vmem:[%s4 + $0x14] sm:$0xf] %vm907, %v983
  %1170 = vst.msk [vmem:[%s4 + $0x18] sm:$0xf] %vm907, %v985
  %1171 = vst.msk [vmem:[%s4 + $0x1c] sm:$0xf] %vm907, %v987
  %1172 = vst.msk [vmem:[%s4 + $0x20] sm:$0xf] %vm907, %v989
  %1173 = vst.msk [vmem:[%s4 + $0x24] sm:$0xf] %vm907, %v991
  %1174 = vst.msk [vmem:[%s4 + $0x28] sm:$0xf] %vm907, %v993
  %1175 = vst.msk [vmem:[%s4 + $0x2c] sm:$0xf] %vm907, %v995
  %1176 = vst.msk [vmem:[%s4 + $0x30] sm:$0xf] %vm907, %v997
  %1177 = vst.msk [vmem:[%s4 + $0x34] sm:$0xf] %vm907, %v999
  %1178 = vst.msk [vmem:[%s4 + $0x38] sm:$0xf] %vm907, %v1001
  %1179 = vst.msk [vmem:[%s4 + $0x3c] sm:$0xf] %vm907, %v1003
  %1180 = vst.msk [vmem:[%s4 + $0x40] sm:$0xf] %vm907, %v1005
  %1181 = vst.msk [vmem:[%s4 + $0x44] sm:$0xf] %vm907, %v1007
  %1182 = vst.msk [vmem:[%s4 + $0x48] sm:$0xf] %vm907, %v1009
  %1183 = vst.msk [vmem:[%s4 + $0x4c] sm:$0xf] %vm907, %v1011
  %1184 = vst.msk [vmem:[%s4 + $0x50] sm:$0xf] %vm907, %v1013
  %1185 = vst.msk [vmem:[%s4 + $0x54] sm:$0xf] %vm907, %v1015
  %1186 = vst.msk [vmem:[%s4 + $0x58] sm:$0xf] %vm907, %v1017
  %1187 = vst.msk [vmem:[%s4 + $0x5c] sm:$0xf] %vm907, %v1019
  %1188 = vst.msk [vmem:[%s4 + $0x60] sm:$0xf] %vm907, %v1021
  %1189 = vst.msk [vmem:[%s4 + $0x64] sm:$0xf] %vm907, %v1023
  %1190 = vst.msk [vmem:[%s4 + $0x68] sm:$0xf] %vm907, %v1025
  %1191 = vst.msk [vmem:[%s4 + $0x6c] sm:$0xf] %vm907, %v1027
  %1192 = vst.msk [vmem:[%s4 + $0x70] sm:$0xf] %vm907, %v1029
  %1193 = vst.msk [vmem:[%s4 + $0x74] sm:$0xf] %vm907, %v1031
  %1194 = vst.msk [vmem:[%s4 + $0x78] sm:$0xf] %vm907, %v1033
  %1195 = vst.msk [vmem:[%s4 + $0x7c] sm:$0xf] %vm907, %v1035
  %1196 = vst.msk [vmem:[%s4 + $0x80] sm:$0xf] %vm907, %v1037
  %1197 = vst.msk [vmem:[%s4 + $0x84] sm:$0xf] %vm907, %v1039
  %1198 = vst.msk [vmem:[%s4 + $0x88] sm:$0xf] %vm907, %v1041
  %1199 = vst.msk [vmem:[%s4 + $0x8c] sm:$0xf] %vm907, %v1043
  %1200 = vst.msk [vmem:[%s4 + $0x90] sm:$0xf] %vm907, %v1045
  %1201 = vst.msk [vmem:[%s4 + $0x94] sm:$0xf] %vm907, %v1047
  %1202 = vst.msk [vmem:[%s4 + $0x98] sm:$0xf] %vm907, %v1049
  %1203 = vst.msk [vmem:[%s4 + $0x9c] sm:$0xf] %vm907, %v1051
  %1204 = vst.msk [vmem:[%s4 + $0xa0] sm:$0xf] %vm907, %v1053
  %1205 = vst.msk [vmem:[%s4 + $0xa4] sm:$0xf] %vm907, %v1055
  %1206 = vst.msk [vmem:[%s4 + $0xa8] sm:$0xf] %vm907, %v1057
  %1207 = vst.msk [vmem:[%s4 + $0xac] sm:$0xf] %vm907, %v1059
  %1208 = vst.msk [vmem:[%s4 + $0xb0] sm:$0xf] %vm907, %v1061
  %1209 = vst.msk [vmem:[%s4 + $0xb4] sm:$0xf] %vm907, %v1063
  %1210 = vst.msk [vmem:[%s4 + $0xb8] sm:$0xf] %vm907, %v1065
  %1211 = vst.msk [vmem:[%s4 + $0xbc] sm:$0xf] %vm907, %v1067
  %1212 = vst.msk [vmem:[%s4 + $0xc0] sm:$0xf] %vm907, %v1069
  %1213 = vst.msk [vmem:[%s4 + $0xc4] sm:$0xf] %vm907, %v1071
  %1214 = vst.msk [vmem:[%s4 + $0xc8] sm:$0xf] %vm907, %v1073
  %1215 = vst.msk [vmem:[%s4 + $0xcc] sm:$0xf] %vm907, %v1075
  %1216 = vst.msk [vmem:[%s4 + $0xd0] sm:$0xf] %vm907, %v1077
  %1217 = vst.msk [vmem:[%s4 + $0xd4] sm:$0xf] %vm907, %v1079
  %1218 = vst.msk [vmem:[%s4 + $0xd8] sm:$0xf] %vm907, %v1081
  %1219 = vst.msk [vmem:[%s4 + $0xdc] sm:$0xf] %vm907, %v1083
  %1220 = vst.msk [vmem:[%s4 + $0xe0] sm:$0xf] %vm907, %v1085
  %1221 = vst.msk [vmem:[%s4 + $0xe4] sm:$0xf] %vm907, %v1087
  %1222 = vst.msk [vmem:[%s4 + $0xe8] sm:$0xf] %vm907, %v1089
  %1223 = vst.msk [vmem:[%s4 + $0xec] sm:$0xf] %vm907, %v1091
  %1224 = vst.msk [vmem:[%s4 + $0xf0] sm:$0xf] %vm907, %v1093
  %1225 = vst.msk [vmem:[%s4 + $0xf4] sm:$0xf] %vm907, %v1095
  %1226 = vst.msk [vmem:[%s4 + $0xf8] sm:$0xf] %vm907, %v1097
  %1227 = vst.msk [vmem:[%s4 + $0xfc] sm:$0xf] %vm907, %v1099
  %1228 = vrot.lane.b32.xlu0 %v779, 64
  %v1229 = vpop.permute.xlu0 %1228
  %1230 = vrot.lane.b32.xlu0 %v780, 64
  %v1231 = vpop.permute.xlu0 %1230
  %1232 = vrot.lane.b32.xlu0 %v781, 64
  %v1233 = vpop.permute.xlu0 %1232
  %1234 = vrot.lane.b32.xlu0 %v782, 64
  %v1235 = vpop.permute.xlu0 %1234
  %1236 = vrot.lane.b32.xlu0 %v783, 64
  %v1237 = vpop.permute.xlu0 %1236
  %1238 = vrot.lane.b32.xlu0 %v784, 64
  %v1239 = vpop.permute.xlu0 %1238
  %1240 = vrot.lane.b32.xlu0 %v785, 64
  %v1241 = vpop.permute.xlu0 %1240
  %1242 = vrot.lane.b32.xlu0 %v786, 64
  %v1243 = vpop.permute.xlu0 %1242
  %1244 = vrot.lane.b32.xlu0 %v787, 64
  %v1245 = vpop.permute.xlu0 %1244
  %1246 = vrot.lane.b32.xlu0 %v788, 64
  %v1247 = vpop.permute.xlu0 %1246
  %1248 = vrot.lane.b32.xlu0 %v789, 64
  %v1249 = vpop.permute.xlu0 %1248
  %1250 = vrot.lane.b32.xlu0 %v790, 64
  %v1251 = vpop.permute.xlu0 %1250
  %1252 = vrot.lane.b32.xlu0 %v791, 64
  %v1253 = vpop.permute.xlu0 %1252
  %1254 = vrot.lane.b32.xlu0 %v792, 64
  %v1255 = vpop.permute.xlu0 %1254
  %1256 = vrot.lane.b32.xlu0 %v793, 64
  %v1257 = vpop.permute.xlu0 %1256
  %1258 = vrot.lane.b32.xlu0 %v794, 64
  %v1259 = vpop.permute.xlu0 %1258
  %1260 = vrot.lane.b32.xlu0 %v795, 64
  %v1261 = vpop.permute.xlu0 %1260
  %1262 = vrot.lane.b32.xlu0 %v796, 64
  %v1263 = vpop.permute.xlu0 %1262
  %1264 = vrot.lane.b32.xlu0 %v797, 64
  %v1265 = vpop.permute.xlu0 %1264
  %1266 = vrot.lane.b32.xlu0 %v798, 64
  %v1267 = vpop.permute.xlu0 %1266
  %1268 = vrot.lane.b32.xlu0 %v799, 64
  %v1269 = vpop.permute.xlu0 %1268
  %1270 = vrot.lane.b32.xlu0 %v800, 64
  %v1271 = vpop.permute.xlu0 %1270
  %1272 = vrot.lane.b32.xlu0 %v801, 64
  %v1273 = vpop.permute.xlu0 %1272
  %1274 = vrot.lane.b32.xlu0 %v802, 64
  %v1275 = vpop.permute.xlu0 %1274
  %1276 = vrot.lane.b32.xlu0 %v803, 64
  %v1277 = vpop.permute.xlu0 %1276
  %1278 = vrot.lane.b32.xlu0 %v804, 64
  %v1279 = vpop.permute.xlu0 %1278
  %1280 = vrot.lane.b32.xlu0 %v805, 64
  %v1281 = vpop.permute.xlu0 %1280
  %1282 = vrot.lane.b32.xlu0 %v806, 64
  %v1283 = vpop.permute.xlu0 %1282
  %1284 = vrot.lane.b32.xlu0 %v807, 64
  %v1285 = vpop.permute.xlu0 %1284
  %1286 = vrot.lane.b32.xlu0 %v808, 64
  %v1287 = vpop.permute.xlu0 %1286
  %1288 = vrot.lane.b32.xlu0 %v809, 64
  %v1289 = vpop.permute.xlu0 %1288
  %1290 = vrot.lane.b32.xlu0 %v810, 64
  %v1291 = vpop.permute.xlu0 %1290
  %1292 = vrot.lane.b32.xlu0 %v811, 64
  %v1293 = vpop.permute.xlu0 %1292
  %1294 = vrot.lane.b32.xlu0 %v812, 64
  %v1295 = vpop.permute.xlu0 %1294
  %1296 = vrot.lane.b32.xlu0 %v813, 64
  %v1297 = vpop.permute.xlu0 %1296
  %1298 = vrot.lane.b32.xlu0 %v814, 64
  %v1299 = vpop.permute.xlu0 %1298
  %1300 = vrot.lane.b32.xlu0 %v815, 64
  %v1301 = vpop.permute.xlu0 %1300
  %1302 = vrot.lane.b32.xlu0 %v816, 64
  %v1303 = vpop.permute.xlu0 %1302
  %1304 = vrot.lane.b32.xlu0 %v817, 64
  %v1305 = vpop.permute.xlu0 %1304
  %1306 = vrot.lane.b32.xlu0 %v818, 64
  %v1307 = vpop.permute.xlu0 %1306
  %1308 = vrot.lane.b32.xlu0 %v819, 64
  %v1309 = vpop.permute.xlu0 %1308
  %1310 = vrot.lane.b32.xlu0 %v820, 64
  %v1311 = vpop.permute.xlu0 %1310
  %1312 = vrot.lane.b32.xlu0 %v821, 64
  %v1313 = vpop.permute.xlu0 %1312
  %1314 = vrot.lane.b32.xlu0 %v822, 64
  %v1315 = vpop.permute.xlu0 %1314
  %1316 = vrot.lane.b32.xlu0 %v823, 64
  %v1317 = vpop.permute.xlu0 %1316
  %1318 = vrot.lane.b32.xlu0 %v824, 64
  %v1319 = vpop.permute.xlu0 %1318
  %1320 = vrot.lane.b32.xlu0 %v825, 64
  %v1321 = vpop.permute.xlu0 %1320
  %1322 = vrot.lane.b32.xlu0 %v826, 64
  %v1323 = vpop.permute.xlu0 %1322
  %1324 = vrot.lane.b32.xlu0 %v827, 64
  %v1325 = vpop.permute.xlu0 %1324
  %1326 = vrot.lane.b32.xlu0 %v828, 64
  %v1327 = vpop.permute.xlu0 %1326
  %1328 = vrot.lane.b32.xlu0 %v829, 64
  %v1329 = vpop.permute.xlu0 %1328
  %1330 = vrot.lane.b32.xlu0 %v830, 64
  %v1331 = vpop.permute.xlu0 %1330
  %1332 = vrot.lane.b32.xlu0 %v831, 64
  %v1333 = vpop.permute.xlu0 %1332
  %1334 = vrot.lane.b32.xlu0 %v832, 64
  %v1335 = vpop.permute.xlu0 %1334
  %1336 = vrot.lane.b32.xlu0 %v833, 64
  %v1337 = vpop.permute.xlu0 %1336
  %1338 = vrot.lane.b32.xlu0 %v834, 64
  %v1339 = vpop.permute.xlu0 %1338
  %1340 = vrot.lane.b32.xlu0 %v835, 64
  %v1341 = vpop.permute.xlu0 %1340
  %1342 = vrot.lane.b32.xlu0 %v836, 64
  %v1343 = vpop.permute.xlu0 %1342
  %1344 = vrot.lane.b32.xlu0 %v837, 64
  %v1345 = vpop.permute.xlu0 %1344
  %1346 = vrot.lane.b32.xlu0 %v838, 64
  %v1347 = vpop.permute.xlu0 %1346
  %1348 = vrot.lane.b32.xlu0 %v839, 64
  %v1349 = vpop.permute.xlu0 %1348
  %1350 = vrot.lane.b32.xlu0 %v840, 64
  %v1351 = vpop.permute.xlu0 %1350
  %1352 = vrot.lane.b32.xlu0 %v841, 64
  %v1353 = vpop.permute.xlu0 %1352
  %1354 = vrot.lane.b32.xlu0 %v842, 64
  %v1355 = vpop.permute.xlu0 %1354
  %1420 = vst.msk [vmem:[%s5] sm:$0xf] %vm907, %v1229
  %1421 = vst.msk [vmem:[%s5 + $0x4] sm:$0xf] %vm907, %v1231
  %1422 = vst.msk [vmem:[%s5 + $0x8] sm:$0xf] %vm907, %v1233
  %1423 = vst.msk [vmem:[%s5 + $0xc] sm:$0xf] %vm907, %v1235
  %1424 = vst.msk [vmem:[%s5 + $0x10] sm:$0xf] %vm907, %v1237
  %1425 = vst.msk [vmem:[%s5 + $0x14] sm:$0xf] %vm907, %v1239
  %1426 = vst.msk [vmem:[%s5 + $0x18] sm:$0xf] %vm907, %v1241
  %1427 = vst.msk [vmem:[%s5 + $0x1c] sm:$0xf] %vm907, %v1243
  %1428 = vst.msk [vmem:[%s5 + $0x20] sm:$0xf] %vm907, %v1245
  %1429 = vst.msk [vmem:[%s5 + $0x24] sm:$0xf] %vm907, %v1247
  %1430 = vst.msk [vmem:[%s5 + $0x28] sm:$0xf] %vm907, %v1249
  %1431 = vst.msk [vmem:[%s5 + $0x2c] sm:$0xf] %vm907, %v1251
  %1432 = vst.msk [vmem:[%s5 + $0x30] sm:$0xf] %vm907, %v1253
  %1433 = vst.msk [vmem:[%s5 + $0x34] sm:$0xf] %vm907, %v1255
  %1434 = vst.msk [vmem:[%s5 + $0x38] sm:$0xf] %vm907, %v1257
  %1435 = vst.msk [vmem:[%s5 + $0x3c] sm:$0xf] %vm907, %v1259
  %1436 = vst.msk [vmem:[%s5 + $0x40] sm:$0xf] %vm907, %v1261
  %1437 = vst.msk [vmem:[%s5 + $0x44] sm:$0xf] %vm907, %v1263
  %1438 = vst.msk [vmem:[%s5 + $0x48] sm:$0xf] %vm907, %v1265
  %1439 = vst.msk [vmem:[%s5 + $0x4c] sm:$0xf] %vm907, %v1267
  %1440 = vst.msk [vmem:[%s5 + $0x50] sm:$0xf] %vm907, %v1269
  %1441 = vst.msk [vmem:[%s5 + $0x54] sm:$0xf] %vm907, %v1271
  %1442 = vst.msk [vmem:[%s5 + $0x58] sm:$0xf] %vm907, %v1273
  %1443 = vst.msk [vmem:[%s5 + $0x5c] sm:$0xf] %vm907, %v1275
  %1444 = vst.msk [vmem:[%s5 + $0x60] sm:$0xf] %vm907, %v1277
  %1445 = vst.msk [vmem:[%s5 + $0x64] sm:$0xf] %vm907, %v1279
  %1446 = vst.msk [vmem:[%s5 + $0x68] sm:$0xf] %vm907, %v1281
  %1447 = vst.msk [vmem:[%s5 + $0x6c] sm:$0xf] %vm907, %v1283
  %1448 = vst.msk [vmem:[%s5 + $0x70] sm:$0xf] %vm907, %v1285
  %1449 = vst.msk [vmem:[%s5 + $0x74] sm:$0xf] %vm907, %v1287
  %1450 = vst.msk [vmem:[%s5 + $0x78] sm:$0xf] %vm907, %v1289
  %1451 = vst.msk [vmem:[%s5 + $0x7c] sm:$0xf] %vm907, %v1291
  %1452 = vst.msk [vmem:[%s5 + $0x80] sm:$0xf] %vm907, %v1293
  %1453 = vst.msk [vmem:[%s5 + $0x84] sm:$0xf] %vm907, %v1295
  %1454 = vst.msk [vmem:[%s5 + $0x88] sm:$0xf] %vm907, %v1297
  %1455 = vst.msk [vmem:[%s5 + $0x8c] sm:$0xf] %vm907, %v1299
  %1456 = vst.msk [vmem:[%s5 + $0x90] sm:$0xf] %vm907, %v1301
  %1457 = vst.msk [vmem:[%s5 + $0x94] sm:$0xf] %vm907, %v1303
  %1458 = vst.msk [vmem:[%s5 + $0x98] sm:$0xf] %vm907, %v1305
  %1459 = vst.msk [vmem:[%s5 + $0x9c] sm:$0xf] %vm907, %v1307
  %1460 = vst.msk [vmem:[%s5 + $0xa0] sm:$0xf] %vm907, %v1309
  %1461 = vst.msk [vmem:[%s5 + $0xa4] sm:$0xf] %vm907, %v1311
  %1462 = vst.msk [vmem:[%s5 + $0xa8] sm:$0xf] %vm907, %v1313
  %1463 = vst.msk [vmem:[%s5 + $0xac] sm:$0xf] %vm907, %v1315
  %1464 = vst.msk [vmem:[%s5 + $0xb0] sm:$0xf] %vm907, %v1317
  %1465 = vst.msk [vmem:[%s5 + $0xb4] sm:$0xf] %vm907, %v1319
  %1466 = vst.msk [vmem:[%s5 + $0xb8] sm:$0xf] %vm907, %v1321
  %1467 = vst.msk [vmem:[%s5 + $0xbc] sm:$0xf] %vm907, %v1323
  %1468 = vst.msk [vmem:[%s5 + $0xc0] sm:$0xf] %vm907, %v1325
  %1469 = vst.msk [vmem:[%s5 + $0xc4] sm:$0xf] %vm907, %v1327
  %1470 = vst.msk [vmem:[%s5 + $0xc8] sm:$0xf] %vm907, %v1329
  %1471 = vst.msk [vmem:[%s5 + $0xcc] sm:$0xf] %vm907, %v1331
  %1472 = vst.msk [vmem:[%s5 + $0xd0] sm:$0xf] %vm907, %v1333
  %1473 = vst.msk [vmem:[%s5 + $0xd4] sm:$0xf] %vm907, %v1335
  %1474 = vst.msk [vmem:[%s5 + $0xd8] sm:$0xf] %vm907, %v1337
  %1475 = vst.msk [vmem:[%s5 + $0xdc] sm:$0xf] %vm907, %v1339
  %1476 = vst.msk [vmem:[%s5 + $0xe0] sm:$0xf] %vm907, %v1341
  %1477 = vst.msk [vmem:[%s5 + $0xe4] sm:$0xf] %vm907, %v1343
  %1478 = vst.msk [vmem:[%s5 + $0xe8] sm:$0xf] %vm907, %v1345
  %1479 = vst.msk [vmem:[%s5 + $0xec] sm:$0xf] %vm907, %v1347
  %1480 = vst.msk [vmem:[%s5 + $0xf0] sm:$0xf] %vm907, %v1349
  %1481 = vst.msk [vmem:[%s5 + $0xf4] sm:$0xf] %vm907, %v1351
  %1482 = vst.msk [vmem:[%s5 + $0xf8] sm:$0xf] %vm907, %v1353
  %1483 = vst.msk [vmem:[%s5 + $0xfc] sm:$0xf] %vm907, %v1355
  // Predicated region
  $region14: #{tpu_custom_call.1} parent=0 // pred_check
    _
  $region15: #{tpu_custom_call.1} parent=0 // pred_check_branch
    %1485 = sbr.rel (0) target = $region17
  $region16: #{tpu_custom_call.1} parent=0 // pred_region
    _
  $region17: #{tpu_custom_call.1} parent=0 // pred_fallthru
    _
  // Predicated region
  $region18: #{tpu_custom_call.1} parent=0 // pred_check
    _
  $region19: #{tpu_custom_call.1} parent=0 // pred_check_branch
    %1487 = sbr.rel (0) target = $region21
  $region20: #{tpu_custom_call.1} parent=0 // pred_region
    _
  $region21: #{tpu_custom_call.1} parent=0 // pred_fallthru
    _
  // Predicated region
  $region22: #{tpu_custom_call.1} parent=0 // pred_check
    _
  $region23: #{tpu_custom_call.1} parent=0 // pred_check_branch
    %1489 = sbr.rel (0) target = $region25
  $region24: #{tpu_custom_call.1} parent=0 // pred_region
    _
  $region25: #{tpu_custom_call.1} parent=0 // pred_fallthru
    _
  // Predicated region
  $region26: #{tpu_custom_call.1} parent=0 // pred_check
    _
  $region27: #{tpu_custom_call.1} parent=0 // pred_check_branch
    %1491 = sbr.rel (0) target = $region29
  $region28: #{tpu_custom_call.1} parent=0 // pred_region
    _
  $region29: #{tpu_custom_call.1} parent=0 // pred_fallthru
    _
  // Predicated region
  $region30: #{tpu_custom_call.1} parent=0 // pred_check
    _
  $region31: #{tpu_custom_call.1} parent=0 // pred_check_branch
    %1493 = sbr.rel (0) target = $region33
  $region32: #{tpu_custom_call.1} parent=0 // pred_region
    _
  $region33: #{tpu_custom_call.1} parent=0 // pred_fallthru
    _
  // Predicated region
  $region34: #{tpu_custom_call.1} parent=0 // pred_check
    _
  $region35: #{tpu_custom_call.1} parent=0 // pred_check_branch
    %1495 = sbr.rel (0) target = $region37
  $region36: #{tpu_custom_call.1} parent=0 // pred_region
    _
  $region37: #{tpu_custom_call.1} parent=0 // pred_fallthru
    _

</llo_original>
